<compile_context>
chip_gen: v7x
topology: tpu7x:2x2x1
jax: 0.10.0
libtpu: 0.0.40
codegen_flags: <defaults>
</compile_context>

<pallas_src>
import functools

import jax
import jax.numpy as jnp
from jax.experimental import pallas as pl
from jax.experimental.pallas import tpu as pltpu

LN_EPS = 1e-5   # torch.nn.LayerNorm default eps
GN_EPS = 1e-5   # torch.nn.GroupNorm default eps


def _silu(x):
    return x * jax.nn.sigmoid(x)


def _layernorm(x, gamma, beta):
    mu = jnp.mean(x, axis=-1, keepdims=True)
    var = jnp.mean((x - mu) ** 2, axis=-1, keepdims=True)
    return (x - mu) * jax.lax.rsqrt(var + LN_EPS) * gamma + beta


def _round_up(n, m):
    return (n + m - 1) // m * m


def _vmem_budget_bytes():
    """~75% of this generation's physical VMEM (v5e/v6e: 128 MiB, v7x: 64 MiB)."""
    try:
        cap = int(getattr(pltpu.get_tpu_info(), "vmem_capacity_bytes", 0))
    except Exception:
        cap = 0
    if cap <= 0:
        cap = 64 * 1024 * 1024          # conservative fallback (v7x per-core VMEM)
    return (cap * 3) // 4


def _pick_tile(total, target, align=128):
    """Largest multiple-of-`align` divisor of `total` that is <= target.
    Falls back to `total`; the per-stage VMEM asserts catch that case."""
    if total <= target:
        return total
    t = (min(target, total) // align) * align
    while t >= align:
        if total % t == 0:
            return t
        t -= align
    return total


def _fit_tile(total, target, unit_bytes, share_bytes, align=128):
    """Tile <= target whose double-buffered streamed footprint fits share_bytes."""
    cap = max(align, ((share_bytes // (2 * unit_bytes)) // align) * align)
    return _pick_tile(total, min(target, cap), align)


# ----------------------------------------------------------------------------
# Stage A: lin0 matmul, streaming w0 over its output columns.
# grid = (h // tn0,), axis "parallel" (independent output column tiles).
# ----------------------------------------------------------------------------
def lin0_matmul_kernel(x_ref, w0_ref, h0_ref):
    h0_ref[...] = jnp.dot(x_ref[...], w0_ref[...],
                          preferred_element_type=jnp.float32)


# ----------------------------------------------------------------------------
# Stage B: lin0's LayerNorm+SiLU + the residual MLP blocks.
# grid = (n_blocks, h // tkb); wm[i] is streamed in (tkb, h) row tiles.
# The evolving activation lives in ONE f32 scratch, pre-split into contraction
# chunks on the leading axis (a_ch[k] is a leading-axis dynamic index => MXU LHS),
# so no dynamic lane-dim slicing and no duplicated bf16 copy is needed.
# ----------------------------------------------------------------------------
def res_blocks_kernel(h0_ref, g0_ref, b0_ref, wm_ref, gm_ref, bm_ref,
                      a_out_ref, a_ch, z_acc):
    i = pl.program_id(0)            # residual block
    k = pl.program_id(1)            # contraction (row) chunk of wm[i]
    nk, _, tkb = a_ch.shape         # static

    # First step: finish lin0 (LayerNorm + SiLU on streamed-in h0) and seed the
    # chunked activation scratch. Dropout(0.5) is identity in eval mode.
    @pl.when(jnp.logical_and(i == 0, k == 0))
    def _():
        a0 = _silu(_layernorm(h0_ref[...], g0_ref[...], b0_ref[...]))
        for kk in range(nk):                       # static unroll, static slices
            a_ch[kk] = a0[:, kk * tkb:(kk + 1) * tkb]

    # bf16 MXU operands, f32 accumulation; direct write on the first chunk.
    part = jnp.dot(a_ch[k].astype(jnp.bfloat16), wm_ref[0],
                   preferred_element_type=jnp.float32)

    @pl.when(k == 0)
    def _():
        z_acc[...] = part

    @pl.when(k > 0)
    def _():
        z_acc[...] += part

    # Last chunk of block i: LayerNorm -> SiLU -> residual add (Dropout(0.25) is
    # identity in eval mode); residual chain stays f32 in the chunked scratch.
    @pl.when(k == nk - 1)
    def _():
        z = _silu(_layernorm(z_acc[...], gm_ref[0], bm_ref[0]))
        for kk in range(nk):
            a_ch[kk] = a_ch[kk] + z[:, kk * tkb:(kk + 1) * tkb]

    @pl.when(jnp.logical_and(i == pl.num_programs(0) - 1, k == nk - 1))
    def _():
        for kk in range(nk):
            a_out_ref[:, kk * tkb:(kk + 1) * tkb] = a_ch[kk].astype(a_out_ref.dtype)


# ----------------------------------------------------------------------------
# Stage C: lin1, streaming w1 over BOTH output columns (parallel) and contraction
# rows (arbitrary). The (B_pad, tn1) output block is resident across k and is
# direct-written on k==0. GroupNorm(1, C) runs outside in plain XLA.
# ----------------------------------------------------------------------------
def lin1_kernel(a_ref, w1_ref, out_ref):
    k = pl.program_id(1)
    part = jnp.dot(a_ref[...], w1_ref[...], preferred_element_type=jnp.float32)

    @pl.when(k == 0)
    def _():
        out_ref[...] = part

    @pl.when(k > 0)
    def _():
        out_ref[...] += part


# ----------------------------------------------------------------------------
# Parameters (synthetic init mirroring _initialize_weights):
#   Linear weights ~ kaiming_normal_(nonlinearity='linear') == N(0, 1/fan_in),
#   stored transposed (in, out) and in bf16 (halves HBM weight traffic);
#   LayerNorm / GroupNorm gamma=1, beta=0 in f32.
# ----------------------------------------------------------------------------
def init_params(key, *, in_dim, h, n_blocks, C, side):
    D1 = C * side * side
    k0, k1, k2 = jax.random.split(key, 3)
    return {
        "w0": (jax.random.normal(k0, (in_dim, h), jnp.float32)
               / jnp.sqrt(in_dim)).astype(jnp.bfloat16),
        "g0": jnp.ones((1, h), jnp.float32),
        "b0": jnp.zeros((1, h), jnp.float32),
        "wm": (jax.random.normal(k1, (n_blocks, h, h), jnp.float32)
               / jnp.sqrt(h)).astype(jnp.bfloat16),
        "gm": jnp.ones((n_blocks, 1, h), jnp.float32),
        "bm": jnp.zeros((n_blocks, 1, h), jnp.float32),
        "w1": (jax.random.normal(k2, (h, D1), jnp.float32)
               / jnp.sqrt(h)).astype(jnp.bfloat16),
        "gn": jnp.ones((C,), jnp.float32),
        "bn": jnp.zeros((C,), jnp.float32),
    }


@functools.partial(jax.jit, static_argnames=("C", "side", "tile_n0", "tile_k_blk",
                                              "tile_k1", "tile_n1"))
def voxel2sd_forward(x, params, *, C, side,
                     tile_n0=None, tile_k_blk=None, tile_k1=None, tile_n1=None):
    B, in_dim = x.shape
    h = params["w0"].shape[1]
    n_blocks = params["wm"].shape[0]
    s2 = side * side
    D1 = C * s2

    budget = _vmem_budget_bytes()
    big = budget >= 80 * 1024 * 1024         # v5e / v6e (128 MiB physical VMEM)

    # Pad batch to a multiple of 8 sublanes; LN/GN are per-row so padded rows never
    # contaminate real rows. Activations fed to the MXU in bf16.
    # TODO(synk): for large B, add a "parallel" batch grid axis instead of growing
    # the resident (B_pad, h)/(B_pad, tn1) blocks.
    B_pad = max(8, _round_up(B, 8))
    xb = jnp.pad(x, ((0, B_pad - B), (0, 0))).astype(jnp.bfloat16)

    # Generation-aware streamed-tile sizes (128-lane multiples dividing the dims).
    tn0 = (_fit_tile(h, 1024 if big else 512, in_dim * 2, (budget * 7) // 10)
           if tile_n0 is None else _pick_tile(h, tile_n0))
    tkb = (_fit_tile(h, 2048 if big else 1024, h * 2, (budget * 3) // 5)
           if tile_k_blk is None else _pick_tile(h, tile_k_blk))
    tk1 = _pick_tile(h, 1024 if tile_k1 is None else tile_k1)
    tn1 = (_fit_tile(D1, 4096 if big else 2048, tk1 * 2, (budget * 3) // 5)
           if tile_n1 is None else _pick_tile(D1, tile_n1))
    nk = h // tkb
    assert h % tn0 == 0 and h % tkb == 0 and h % tk1 == 0 and D1 % tn1 == 0

    # Per-stage double-buffered VMEM footprints must fit the scoped budget
    # (also catches _pick_tile's whole-dim fallback on awkward shapes).
    fA = 2 * (in_dim * tn0 * 2 + B_pad * in_dim * 2 + B_pad * tn0 * 4)
    fB = (2 * (tkb * h * 2 + B_pad * h * 4 + B_pad * h * 2 + 4 * h * 4)
          + 2 * B_pad * h * 4)                                   # a_ch + z_acc
    fC = 2 * (tk1 * tn1 * 2 + B_pad * tk1 * 2 + B_pad * tn1 * 4)
    for name, f in (("lin0", fA), ("res_blocks", fB), ("lin1", fC)):
        assert f <= budget, f"{name} VMEM footprint {f} B exceeds budget {budget} B"

    # ---- stage A: lin0 matmul (w0 streamed over output columns) ----
    h0 = pl.pallas_call(
        lin0_matmul_kernel,
        out_shape=jax.ShapeDtypeStruct((B_pad, h), jnp.float32),
        grid=(h // tn0,),
        in_specs=[pl.BlockSpec((B_pad, in_dim), lambda j: (0, 0)),
                  pl.BlockSpec((in_dim, tn0), lambda j: (0, j))],
        out_specs=pl.BlockSpec((B_pad, tn0), lambda j: (0, j)),
        compiler_params=pltpu.CompilerParams(
            dimension_semantics=("parallel",),
            vmem_limit_bytes=budget),
        cost_estimate=pl.CostEstimate(
            flops=2 * B_pad * in_dim * h,
            transcendentals=0,
            bytes_accessed=in_dim * h * 2 + B_pad * (in_dim * 2 + h * 4)),
    )(xb, params["w0"])

    # ---- stage B: lin0 LN+SiLU + residual MLP blocks (wm streamed per block) ----
    a_final = pl.pallas_call(
        res_blocks_kernel,
        out_shape=jax.ShapeDtypeStruct((B_pad, h), jnp.bfloat16),
        grid=(n_blocks, nk),
        in_specs=[
            pl.BlockSpec((B_pad, h), lambda i, k: (0, 0)),       # h0 (resident)
            pl.BlockSpec((1, h), lambda i, k: (0, 0)),           # lin0 LN gamma
            pl.BlockSpec((1, h), lambda i, k: (0, 0)),           # lin0 LN beta
            pl.BlockSpec((1, tkb, h), lambda i, k: (i, k, 0)),   # wm row-tile stream
            pl.BlockSpec((1, 1, h), lambda i, k: (i, 0, 0)),     # block LN gamma
            pl.BlockSpec((1, 1, h), lambda i, k: (i, 0, 0)),     # block LN beta
        ],
        out_specs=pl.BlockSpec((B_pad, h), lambda i, k: (0, 0)),
        scratch_shapes=[
            pltpu.VMEM((nk, B_pad, tkb), jnp.float32),           # activation chunks
            pltpu.VMEM((B_pad, h), jnp.float32),                 # z accumulator
        ],
        compiler_params=pltpu.CompilerParams(
            dimension_semantics=("arbitrary", "arbitrary"),
            vmem_limit_bytes=budget),
        cost_estimate=pl.CostEstimate(
            flops=2 * B_pad * h * h * n_blocks,
            transcendentals=B_pad * h * (n_blocks + 1),
            bytes_accessed=(n_blocks * (h * h * 2 + 2 * h * 4)
                            + B_pad * h * 4 + B_pad * h * 2 + 2 * h * 4)),
    )(h0, params["g0"], params["b0"], params["wm"], params["gm"], params["bm"])

    # ---- stage C: lin1 (w1 streamed over N x K tiles, N axis parallel) ----
    flat = pl.pallas_call(
        lin1_kernel,
        out_shape=jax.ShapeDtypeStruct((B_pad, D1), jnp.float32),
        grid=(D1 // tn1, h // tk1),
        in_specs=[
            pl.BlockSpec((B_pad, tk1), lambda j, k: (0, k)),     # activation K-chunks
            pl.BlockSpec((tk1, tn1), lambda j, k: (k, j)),       # w1 tile stream
        ],
        out_specs=pl.BlockSpec((B_pad, tn1), lambda j, k: (0, j)),
        compiler_params=pltpu.CompilerParams(
            dimension_semantics=("parallel", "arbitrary"),
            vmem_limit_bytes=budget),
        cost_estimate=pl.CostEstimate(
            flops=2 * B_pad * h * D1,
            transcendentals=0,
            bytes_accessed=(h * D1 * 2 + (D1 // tn1) * B_pad * h * 2
                            + B_pad * D1 * 4)),
    )(a_final, params["w1"])

    # GroupNorm(1, C): full-row stats + per-channel affine in plain XLA (<1% of the
    # work); keeps the matmul kernel free of a vreg-spilling full-D1 epilogue.
    y = flat[:B]
    mu = jnp.mean(y, axis=-1, keepdims=True)
    var = jnp.mean(jnp.square(y - mu), axis=-1, keepdims=True)
    y = (y - mu) * jax.lax.rsqrt(var + GN_EPS)
    y = y.reshape(B, C, s2) * params["gn"][None, :, None] + params["bn"][None, :, None]
    # Same as PyTorch: x.reshape(B, -1, side, side) -> NCHW latent fed to decoders.
    return y.reshape(B, C, side, side)


def _reference_forward(x, params, *, C, side):
    """Pure-JAX reference of the same math (same bf16/f32 mixed precision)."""
    a = _silu(_layernorm(
        jnp.dot(x.astype(jnp.bfloat16), params["w0"],
                preferred_element_type=jnp.float32),
        params["g0"], params["b0"]))
    for i in range(params["wm"].shape[0]):
        z = jnp.dot(a.astype(jnp.bfloat16), params["wm"][i],
                    preferred_element_type=jnp.float32)
        a = _silu(_layernorm(z, params["gm"][i], params["bm"][i])) + a
    y = jnp.dot(a.astype(jnp.bfloat16), params["w1"],
                preferred_element_type=jnp.float32)
    mu = jnp.mean(y, axis=-1, keepdims=True)
    var = jnp.mean(jnp.square(y - mu), axis=-1, keepdims=True)
    y = (y - mu) * jax.lax.rsqrt(var + GN_EPS)
    s2 = side * side
    y = (y.reshape(x.shape[0], C, s2) * params["gn"][None, :, None]
         + params["bn"][None, :, None])
    return y.reshape(x.shape[0], C, side, side)


if __name__ == "__main__":
    # Small shapes consistent with the module's structure ('4x'-style head at
    # reduced width): lin0 in_dim->h, n_blocks residual blocks, lin1 -> C*side*side,
    # GroupNorm(1, C) on the (B, C, side, side) latent (side = 8).
    B, in_dim, h, n_blocks = 2, 128, 256, 2
    C, side = 64, 8

    key = jax.random.PRNGKey(0)
    kx, kp = jax.random.split(key)
    x = jax.random.normal(kx, (B, in_dim), jnp.float32)
    params = init_params(kp, in_dim=in_dim, h=h, n_blocks=n_blocks, C=C, side=side)

    # Small explicit tiles so every multi-chunk weight-streaming path (including the
    # 2-D stage-C grid) is exercised at demo size; production uses the auto tiles.
    out = voxel2sd_forward(x, params, C=C, side=side,
                           tile_n0=128, tile_k_blk=128, tile_k1=128, tile_n1=512)
    out = jax.block_until_ready(out)

    ref = _reference_forward(x, params, C=C, side=side)
    assert out.shape == (B, C, side, side)
    assert jnp.allclose(out, ref, atol=2e-2, rtol=2e-2), \
        float(jnp.max(jnp.abs(out - ref)))

    print("KERNEL_OK")
</pallas_src>

<mosaic_0001>
module attributes {stable_mosaic.version = 11 : i64} {
  func.func @lin0_matmul_kernel(%arg0: i32, %arg1: memref<8x128xbf16, #tpu.memory_space<vmem>>, %arg2: memref<128x128xbf16, #tpu.memory_space<vmem>>, %arg3: memref<8x128xf32, #tpu.memory_space<vmem>>) attributes {dimension_semantics = [#tpu.dimension_semantics<parallel>], iteration_bounds = array<i64: 2>, scalar_prefetch = 0 : i64, scratch_operands = 0 : i64, tpu.core_type = #tpu.core_type<tc>, window_params = [{pipeline_mode = #tpu.pipeline_mode<synchronous>, transform_indices = @transform_0, window_bounds = array<i64: 8, 128>}, {transform_indices = @transform_1, window_bounds = array<i64: 128, 128>}, {transform_indices = @transform_2, window_bounds = array<i64: 8, 128>}]} {
    %c0 = arith.constant 0 : index
    %c0_0 = arith.constant 0 : index
    %0 = vector.load %arg1[%c0, %c0_0] : memref<8x128xbf16, #tpu.memory_space<vmem>>, vector<8x128xbf16>
    %c0_1 = arith.constant 0 : index
    %c0_2 = arith.constant 0 : index
    %1 = vector.load %arg2[%c0_1, %c0_2] : memref<128x128xbf16, #tpu.memory_space<vmem>>, vector<128x128xbf16>
    %cst = arith.constant dense<0.000000e+00> : vector<8x128xf32>
    %2 = tpu.matmul %0, %1, %cst {dimension_numbers = #tpu.dot_dimension_numbers<[1], [0], [0], [1], [0, 0, 1, 1], [], []>} : vector<8x128xbf16>, vector<128x128xbf16>, vector<8x128xf32> -> vector<8x128xf32>
    %c0_3 = arith.constant 0 : index
    %c0_4 = arith.constant 0 : index
    %3 = vector.load %arg3[%c0_3, %c0_4] : memref<8x128xf32, #tpu.memory_space<vmem>>, vector<8x128xf32>
    tpu.vector_store %arg3[%c0_3, %c0_4], %2 {strides = array<i32>} : memref<8x128xf32, #tpu.memory_space<vmem>>, vector<8x128xf32>,
    return
  }
  func.func @transform_0(%arg0: i32) -> (i32, i32) {
    %c0_i32 = arith.constant 0 : i32
    %c0_i32_0 = arith.constant 0 : i32
    %c0_i32_1 = arith.constant 0 : i32
    return %c0_i32, %c0_i32_0 : i32, i32
  }
  func.func @transform_1(%arg0: i32) -> (i32, i32) {
    %c0_i32 = arith.constant 0 : i32
    %c0_i32_0 = arith.constant 0 : i32
    return %c0_i32, %arg0 : i32, i32
  }
  func.func @transform_2(%arg0: i32) -> (i32, i32) {
    %c0_i32 = arith.constant 0 : i32
    %c0_i32_0 = arith.constant 0 : i32
    return %c0_i32, %arg0 : i32, i32
  }
}

module attributes {stable_mosaic.version = 11 : i64} {
  func.func @res_blocks_kernel(%arg0: i32, %arg1: i32, %arg2: memref<8x256xf32, #tpu.memory_space<vmem>>, %arg3: memref<1x256xf32, #tpu.memory_space<vmem>>, %arg4: memref<1x256xf32, #tpu.memory_space<vmem>>, %arg5: memref<1x128x256xbf16, #tpu.memory_space<vmem>>, %arg6: memref<1x1x256xf32, #tpu.memory_space<vmem>>, %arg7: memref<1x1x256xf32, #tpu.memory_space<vmem>>, %arg8: memref<8x256xbf16, #tpu.memory_space<vmem>>, %arg9: memref<2x8x128xf32, #tpu.memory_space<vmem>>, %arg10: memref<8x256xf32, #tpu.memory_space<vmem>>) attributes {dimension_semantics = [#tpu.dimension_semantics<arbitrary>, #tpu.dimension_semantics<arbitrary>], iteration_bounds = array<i64: 2, 2>, scalar_prefetch = 0 : i64, scratch_operands = 2 : i64, tpu.core_type = #tpu.core_type<tc>, window_params = [{pipeline_mode = #tpu.pipeline_mode<synchronous>, transform_indices = @transform_0, window_bounds = array<i64: 8, 256>}, {pipeline_mode = #tpu.pipeline_mode<synchronous>, transform_indices = @transform_1, window_bounds = array<i64: 1, 256>}, {pipeline_mode = #tpu.pipeline_mode<synchronous>, transform_indices = @transform_2, window_bounds = array<i64: 1, 256>}, {transform_indices = @transform_3, window_bounds = array<i64: 1, 128, 256>}, {transform_indices = @transform_4, window_bounds = array<i64: 1, 1, 256>}, {transform_indices = @transform_5, window_bounds = array<i64: 1, 1, 256>}, {pipeline_mode = #tpu.pipeline_mode<synchronous>, transform_indices = @transform_6, window_bounds = array<i64: 8, 256>}]} {
    %c0_i32 = arith.constant 0 : i32
    %0 = arith.cmpi eq, %arg0, %c0_i32 : i32
    %c0_i32_0 = arith.constant 0 : i32
    %1 = arith.cmpi eq, %arg1, %c0_i32_0 : i32
    %2 = arith.andi %0, %1 : i1
    %3 = arith.extui %2 : i1 to i32
    %c0_i32_1 = arith.constant 0 : i32
    %4 = arith.cmpi ne, %3, %c0_i32_1 : i32
    scf.if %4 {
      %c0_14 = arith.constant 0 : index
      %c0_15 = arith.constant 0 : index
      %26 = vector.load %arg2[%c0_14, %c0_15] : memref<8x256xf32, #tpu.memory_space<vmem>>, vector<8x256xf32>
      %c0_16 = arith.constant 0 : index
      %c0_17 = arith.constant 0 : index
      %27 = vector.load %arg3[%c0_16, %c0_17] : memref<1x256xf32, #tpu.memory_space<vmem>>, vector<1x256xf32>
      %c0_18 = arith.constant 0 : index
      %c0_19 = arith.constant 0 : index
      %28 = vector.load %arg4[%c0_18, %c0_19] : memref<1x256xf32, #tpu.memory_space<vmem>>, vector<1x256xf32>
      %cst_20 = arith.constant dense<0.000000e+00> : vector<8xf32>
      %29 = vector.multi_reduction <add>, %26, %cst_20 [1] : vector<8x256xf32> to vector<8xf32>
      %30 = vector.shape_cast %29 : vector<8xf32> to vector<8x1xf32>
      %cst_21 = arith.constant 2.560000e+02 : f32
      %31 = vector.broadcast %cst_21 : f32 to vector<8x1xf32>
      %32 = arith.divf %30, %31 : vector<8x1xf32>
      %33 = vector.broadcast %32 : vector<8x1xf32> to vector<8x256xf32>
      %34 = arith.subf %26, %33 : vector<8x256xf32>
      %35 = arith.mulf %34, %34 : vector<8x256xf32>
      %cst_22 = arith.constant dense<0.000000e+00> : vector<8xf32>
      %36 = vector.multi_reduction <add>, %35, %cst_22 [1] : vector<8x256xf32> to vector<8xf32>
      %37 = vector.shape_cast %36 : vector<8xf32> to vector<8x1xf32>
      %cst_23 = arith.constant 2.560000e+02 : f32
      %38 = vector.broadcast %cst_23 : f32 to vector<8x1xf32>
      %39 = arith.divf %37, %38 : vector<8x1xf32>
      %40 = vector.broadcast %32 : vector<8x1xf32> to vector<8x256xf32>
      %41 = arith.subf %26, %40 : vector<8x256xf32>
      %cst_24 = arith.constant 9.99999974E-6 : f32
      %42 = vector.broadcast %cst_24 : f32 to vector<8x1xf32>
      %43 = arith.addf %39, %42 : vector<8x1xf32>
      %44 = math.rsqrt %43 : vector<8x1xf32>
      %45 = vector.broadcast %44 : vector<8x1xf32> to vector<8x256xf32>
      %46 = arith.mulf %41, %45 : vector<8x256xf32>
      %47 = vector.broadcast %27 : vector<1x256xf32> to vector<8x256xf32>
      %48 = arith.mulf %46, %47 : vector<8x256xf32>
      %49 = vector.broadcast %28 : vector<1x256xf32> to vector<8x256xf32>
      %50 = arith.addf %48, %49 : vector<8x256xf32>
      %51 = arith.negf %50 : vector<8x256xf32>
      %52 = math.exp %51 : vector<8x256xf32>
      %cst_25 = arith.constant 1.000000e+00 : f32
      %53 = vector.broadcast %cst_25 : f32 to vector<8x256xf32>
      %54 = arith.addf %53, %52 : vector<8x256xf32>
      %55 = arith.divf %53, %54 : vector<8x256xf32>
      %56 = arith.mulf %50, %55 : vector<8x256xf32>
      %57 = vector.extract_strided_slice %56 {offsets = [0, 0], sizes = [8, 128], strides = [1, 1]} : vector<8x256xf32> to vector<8x128xf32>
      %c0_26 = arith.constant 0 : index
      %c0_27 = arith.constant 0 : index
      %c0_28 = arith.constant 0 : index
      %58 = vector.load %arg9[%c0_26, %c0_27, %c0_28] : memref<2x8x128xf32, #tpu.memory_space<vmem>>, vector<1x8x128xf32>
      %59 = vector.shape_cast %58 : vector<1x8x128xf32> to vector<8x128xf32>
      %60 = vector.shape_cast %57 : vector<8x128xf32> to vector<1x8x128xf32>
      tpu.vector_store %arg9[%c0_26, %c0_27, %c0_28], %60 {strides = array<i32>} : memref<2x8x128xf32, #tpu.memory_space<vmem>>, vector<1x8x128xf32>,
      %61 = vector.extract_strided_slice %56 {offsets = [0, 128], sizes = [8, 128], strides = [1, 1]} : vector<8x256xf32> to vector<8x128xf32>
      %c1 = arith.constant 1 : index
      %c0_29 = arith.constant 0 : index
      %c0_30 = arith.constant 0 : index
      %62 = vector.load %arg9[%c1, %c0_29, %c0_30] : memref<2x8x128xf32, #tpu.memory_space<vmem>>, vector<1x8x128xf32>
      %63 = vector.shape_cast %62 : vector<1x8x128xf32> to vector<8x128xf32>
      %64 = vector.shape_cast %61 : vector<8x128xf32> to vector<1x8x128xf32>
      tpu.vector_store %arg9[%c1, %c0_29, %c0_30], %64 {strides = array<i32>} : memref<2x8x128xf32, #tpu.memory_space<vmem>>, vector<1x8x128xf32>,
    } else {
    }
    %5 = arith.index_cast %arg1 : i32 to index
    %c0 = arith.constant 0 : index
    %c0_2 = arith.constant 0 : index
    %6 = vector.load %arg9[%5, %c0, %c0_2] : memref<2x8x128xf32, #tpu.memory_space<vmem>>, vector<1x8x128xf32>
    %7 = vector.shape_cast %6 : vector<1x8x128xf32> to vector<8x128xf32>
    %8 = arith.truncf %7 : vector<8x128xf32> to vector<8x128xbf16>
    %c0_3 = arith.constant 0 : index
    %c0_4 = arith.constant 0 : index
    %c0_5 = arith.constant 0 : index
    %9 = vector.load %arg5[%c0_3, %c0_4, %c0_5] : memref<1x128x256xbf16, #tpu.memory_space<vmem>>, vector<1x128x256xbf16>
    %10 = vector.shape_cast %9 : vector<1x128x256xbf16> to vector<128x256xbf16>
    %cst = arith.constant dense<0.000000e+00> : vector<8x256xf32>
    %11 = tpu.matmul %8, %10, %cst {dimension_numbers = #tpu.dot_dimension_numbers<[1], [0], [0], [1], [0, 0, 1, 1], [], []>} : vector<8x128xbf16>, vector<128x256xbf16>, vector<8x256xf32> -> vector<8x256xf32>
    %c0_i32_6 = arith.constant 0 : i32
    %12 = arith.cmpi eq, %arg1, %c0_i32_6 : i32
    %13 = arith.extui %12 : i1 to i32
    %c0_i32_7 = arith.constant 0 : i32
    %14 = arith.cmpi ne, %13, %c0_i32_7 : i32
    scf.if %14 {
      %c0_14 = arith.constant 0 : index
      %c0_15 = arith.constant 0 : index
      %26 = vector.load %arg10[%c0_14, %c0_15] : memref<8x256xf32, #tpu.memory_space<vmem>>, vector<8x256xf32>
      tpu.vector_store %arg10[%c0_14, %c0_15], %11 {strides = array<i32>} : memref<8x256xf32, #tpu.memory_space<vmem>>, vector<8x256xf32>,
    } else {
    }
    %c0_i32_8 = arith.constant 0 : i32
    %15 = arith.cmpi sgt, %arg1, %c0_i32_8 : i32
    %16 = arith.extui %15 : i1 to i32
    %c0_i32_9 = arith.constant 0 : i32
    %17 = arith.cmpi ne, %16, %c0_i32_9 : i32
    scf.if %17 {
      %c0_14 = arith.constant 0 : index
      %c0_15 = arith.constant 0 : index
      %26 = vector.load %arg10[%c0_14, %c0_15] : memref<8x256xf32, #tpu.memory_space<vmem>>, vector<8x256xf32>
      %27 = arith.addf %26, %11 : vector<8x256xf32>
      %c0_16 = arith.constant 0 : index
      %c0_17 = arith.constant 0 : index
      %28 = vector.load %arg10[%c0_16, %c0_17] : memref<8x256xf32, #tpu.memory_space<vmem>>, vector<8x256xf32>
      tpu.vector_store %arg10[%c0_16, %c0_17], %27 {strides = array<i32>} : memref<8x256xf32, #tpu.memory_space<vmem>>, vector<8x256xf32>,
    } else {
    }
    %c1_i32 = arith.constant 1 : i32
    %18 = arith.cmpi eq, %arg1, %c1_i32 : i32
    %19 = arith.extui %18 : i1 to i32
    %c0_i32_10 = arith.constant 0 : i32
    %20 = arith.cmpi ne, %19, %c0_i32_10 : i32
    scf.if %20 {
      %c0_14 = arith.constant 0 : index
      %c0_15 = arith.constant 0 : index
      %26 = vector.load %arg10[%c0_14, %c0_15] : memref<8x256xf32, #tpu.memory_space<vmem>>, vector<8x256xf32>
      %c0_16 = arith.constant 0 : index
      %c0_17 = arith.constant 0 : index
      %c0_18 = arith.constant 0 : index
      %27 = vector.load %arg6[%c0_16, %c0_17, %c0_18] : memref<1x1x256xf32, #tpu.memory_space<vmem>>, vector<1x1x256xf32>
      %28 = vector.shape_cast %27 : vector<1x1x256xf32> to vector<1x256xf32>
      %c0_19 = arith.constant 0 : index
      %c0_20 = arith.constant 0 : index
      %c0_21 = arith.constant 0 : index
      %29 = vector.load %arg7[%c0_19, %c0_20, %c0_21] : memref<1x1x256xf32, #tpu.memory_space<vmem>>, vector<1x1x256xf32>
      %30 = vector.shape_cast %29 : vector<1x1x256xf32> to vector<1x256xf32>
      %cst_22 = arith.constant dense<0.000000e+00> : vector<8xf32>
      %31 = vector.multi_reduction <add>, %26, %cst_22 [1] : vector<8x256xf32> to vector<8xf32>
      %32 = vector.shape_cast %31 : vector<8xf32> to vector<8x1xf32>
      %cst_23 = arith.constant 2.560000e+02 : f32
      %33 = vector.broadcast %cst_23 : f32 to vector<8x1xf32>
      %34 = arith.divf %32, %33 : vector<8x1xf32>
      %35 = vector.broadcast %34 : vector<8x1xf32> to vector<8x256xf32>
      %36 = arith.subf %26, %35 : vector<8x256xf32>
      %37 = arith.mulf %36, %36 : vector<8x256xf32>
      %cst_24 = arith.constant dense<0.000000e+00> : vector<8xf32>
      %38 = vector.multi_reduction <add>, %37, %cst_24 [1] : vector<8x256xf32> to vector<8xf32>
      %39 = vector.shape_cast %38 : vector<8xf32> to vector<8x1xf32>
      %cst_25 = arith.constant 2.560000e+02 : f32
      %40 = vector.broadcast %cst_25 : f32 to vector<8x1xf32>
      %41 = arith.divf %39, %40 : vector<8x1xf32>
      %42 = vector.broadcast %34 : vector<8x1xf32> to vector<8x256xf32>
      %43 = arith.subf %26, %42 : vector<8x256xf32>
      %cst_26 = arith.constant 9.99999974E-6 : f32
      %44 = vector.broadcast %cst_26 : f32 to vector<8x1xf32>
      %45 = arith.addf %41, %44 : vector<8x1xf32>
      %46 = math.rsqrt %45 : vector<8x1xf32>
      %47 = vector.broadcast %46 : vector<8x1xf32> to vector<8x256xf32>
      %48 = arith.mulf %43, %47 : vector<8x256xf32>
      %49 = vector.broadcast %28 : vector<1x256xf32> to vector<8x256xf32>
      %50 = arith.mulf %48, %49 : vector<8x256xf32>
      %51 = vector.broadcast %30 : vector<1x256xf32> to vector<8x256xf32>
      %52 = arith.addf %50, %51 : vector<8x256xf32>
      %53 = arith.negf %52 : vector<8x256xf32>
      %54 = math.exp %53 : vector<8x256xf32>
      %cst_27 = arith.constant 1.000000e+00 : f32
      %55 = vector.broadcast %cst_27 : f32 to vector<8x256xf32>
      %56 = arith.addf %55, %54 : vector<8x256xf32>
      %57 = arith.divf %55, %56 : vector<8x256xf32>
      %58 = arith.mulf %52, %57 : vector<8x256xf32>
      %c0_28 = arith.constant 0 : index
      %c0_29 = arith.constant 0 : index
      %c0_30 = arith.constant 0 : index
      %59 = vector.load %arg9[%c0_28, %c0_29, %c0_30] : memref<2x8x128xf32, #tpu.memory_space<vmem>>, vector<1x8x128xf32>
      %60 = vector.shape_cast %59 : vector<1x8x128xf32> to vector<8x128xf32>
      %61 = vector.extract_strided_slice %58 {offsets = [0, 0], sizes = [8, 128], strides = [1, 1]} : vector<8x256xf32> to vector<8x128xf32>
      %62 = arith.addf %60, %61 : vector<8x128xf32>
      %c0_31 = arith.constant 0 : index
      %c0_32 = arith.constant 0 : index
      %c0_33 = arith.constant 0 : index
      %63 = vector.load %arg9[%c0_31, %c0_32, %c0_33] : memref<2x8x128xf32, #tpu.memory_space<vmem>>, vector<1x8x128xf32>
      %64 = vector.shape_cast %63 : vector<1x8x128xf32> to vector<8x128xf32>
      %65 = vector.shape_cast %62 : vector<8x128xf32> to vector<1x8x128xf32>
      tpu.vector_store %arg9[%c0_31, %c0_32, %c0_33], %65 {strides = array<i32>} : memref<2x8x128xf32, #tpu.memory_space<vmem>>, vector<1x8x128xf32>,
      %c1 = arith.constant 1 : index
      %c0_34 = arith.constant 0 : index
      %c0_35 = arith.constant 0 : index
      %66 = vector.load %arg9[%c1, %c0_34, %c0_35] : memref<2x8x128xf32, #tpu.memory_space<vmem>>, vector<1x8x128xf32>
      %67 = vector.shape_cast %66 : vector<1x8x128xf32> to vector<8x128xf32>
      %68 = vector.extract_strided_slice %58 {offsets = [0, 128], sizes = [8, 128], strides = [1, 1]} : vector<8x256xf32> to vector<8x128xf32>
      %69 = arith.addf %67, %68 : vector<8x128xf32>
      %c1_36 = arith.constant 1 : index
      %c0_37 = arith.constant 0 : index
      %c0_38 = arith.constant 0 : index
      %70 = vector.load %arg9[%c1_36, %c0_37, %c0_38] : memref<2x8x128xf32, #tpu.memory_space<vmem>>, vector<1x8x128xf32>
      %71 = vector.shape_cast %70 : vector<1x8x128xf32> to vector<8x128xf32>
      %72 = vector.shape_cast %69 : vector<8x128xf32> to vector<1x8x128xf32>
      tpu.vector_store %arg9[%c1_36, %c0_37, %c0_38], %72 {strides = array<i32>} : memref<2x8x128xf32, #tpu.memory_space<vmem>>, vector<1x8x128xf32>,
    } else {
    }
    %c1_i32_11 = arith.constant 1 : i32
    %21 = arith.cmpi eq, %arg0, %c1_i32_11 : i32
    %c1_i32_12 = arith.constant 1 : i32
    %22 = arith.cmpi eq, %arg1, %c1_i32_12 : i32
    %23 = arith.andi %21, %22 : i1
    %24 = arith.extui %23 : i1 to i32
    %c0_i32_13 = arith.constant 0 : i32
    %25 = arith.cmpi ne, %24, %c0_i32_13 : i32
    scf.if %25 {
      %c0_14 = arith.constant 0 : index
      %c0_15 = arith.constant 0 : index
      %c0_16 = arith.constant 0 : index
      %26 = vector.load %arg9[%c0_14, %c0_15, %c0_16] : memref<2x8x128xf32, #tpu.memory_space<vmem>>, vector<1x8x128xf32>
      %27 = vector.shape_cast %26 : vector<1x8x128xf32> to vector<8x128xf32>
      %28 = arith.truncf %27 : vector<8x128xf32> to vector<8x128xbf16>
      %c0_17 = arith.constant 0 : index
      %c0_18 = arith.constant 0 : index
      %29 = vector.load %arg8[%c0_17, %c0_18] : memref<8x256xbf16, #tpu.memory_space<vmem>>, vector<8x128xbf16>
      tpu.vector_store %arg8[%c0_17, %c0_18], %28 {strides = array<i32>} : memref<8x256xbf16, #tpu.memory_space<vmem>>, vector<8x128xbf16>,
      %c1 = arith.constant 1 : index
      %c0_19 = arith.constant 0 : index
      %c0_20 = arith.constant 0 : index
      %30 = vector.load %arg9[%c1, %c0_19, %c0_20] : memref<2x8x128xf32, #tpu.memory_space<vmem>>, vector<1x8x128xf32>
      %31 = vector.shape_cast %30 : vector<1x8x128xf32> to vector<8x128xf32>
      %32 = arith.truncf %31 : vector<8x128xf32> to vector<8x128xbf16>
      %c0_21 = arith.constant 0 : index
      %c128 = arith.constant 128 : index
      %33 = vector.load %arg8[%c0_21, %c128] : memref<8x256xbf16, #tpu.memory_space<vmem>>, vector<8x128xbf16>
      tpu.vector_store %arg8[%c0_21, %c128], %32 {strides = array<i32>} : memref<8x256xbf16, #tpu.memory_space<vmem>>, vector<8x128xbf16>,
    } else {
    }
    return
  }
  func.func @transform_0(%arg0: i32, %arg1: i32) -> (i32, i32) {
    %c0_i32 = arith.constant 0 : i32
    %c0_i32_0 = arith.constant 0 : i32
    %c0_i32_1 = arith.constant 0 : i32
    return %c0_i32, %c0_i32_0 : i32, i32
  }
  func.func @transform_1(%arg0: i32, %arg1: i32) -> (i32, i32) {
    %c0_i32 = arith.constant 0 : i32
    %c0_i32_0 = arith.constant 0 : i32
    %c0_i32_1 = arith.constant 0 : i32
    return %c0_i32, %c0_i32_0 : i32, i32
  }
  func.func @transform_2(%arg0: i32, %arg1: i32) -> (i32, i32) {
    %c0_i32 = arith.constant 0 : i32
    %c0_i32_0 = arith.constant 0 : i32
    %c0_i32_1 = arith.constant 0 : i32
    return %c0_i32, %c0_i32_0 : i32, i32
  }
  func.func @transform_3(%arg0: i32, %arg1: i32) -> (i32, i32, i32) {
    %c0_i32 = arith.constant 0 : i32
    %c0_i32_0 = arith.constant 0 : i32
    return %arg0, %arg1, %c0_i32 : i32, i32, i32
  }
  func.func @transform_4(%arg0: i32, %arg1: i32) -> (i32, i32, i32) {
    %c0_i32 = arith.constant 0 : i32
    %c0_i32_0 = arith.constant 0 : i32
    %c0_i32_1 = arith.constant 0 : i32
    return %arg0, %c0_i32, %c0_i32_0 : i32, i32, i32
  }
  func.func @transform_5(%arg0: i32, %arg1: i32) -> (i32, i32, i32) {
    %c0_i32 = arith.constant 0 : i32
    %c0_i32_0 = arith.constant 0 : i32
    %c0_i32_1 = arith.constant 0 : i32
    return %arg0, %c0_i32, %c0_i32_0 : i32, i32, i32
  }
  func.func @transform_6(%arg0: i32, %arg1: i32) -> (i32, i32) {
    %c0_i32 = arith.constant 0 : i32
    %c0_i32_0 = arith.constant 0 : i32
    %c0_i32_1 = arith.constant 0 : i32
    return %c0_i32, %c0_i32_0 : i32, i32
  }
}

module attributes {stable_mosaic.version = 11 : i64} {
  func.func @lin1_kernel(%arg0: i32, %arg1: i32, %arg2: memref<8x128xbf16, #tpu.memory_space<vmem>>, %arg3: memref<128x512xbf16, #tpu.memory_space<vmem>>, %arg4: memref<8x512xf32, #tpu.memory_space<vmem>>) attributes {dimension_semantics = [#tpu.dimension_semantics<parallel>, #tpu.dimension_semantics<arbitrary>], iteration_bounds = array<i64: 8, 2>, scalar_prefetch = 0 : i64, scratch_operands = 0 : i64, tpu.core_type = #tpu.core_type<tc>, window_params = [{transform_indices = @transform_0, window_bounds = array<i64: 8, 128>}, {transform_indices = @transform_1, window_bounds = array<i64: 128, 512>}, {transform_indices = @transform_2, window_bounds = array<i64: 8, 512>}]} {
    %c0 = arith.constant 0 : index
    %c0_0 = arith.constant 0 : index
    %0 = vector.load %arg2[%c0, %c0_0] : memref<8x128xbf16, #tpu.memory_space<vmem>>, vector<8x128xbf16>
    %c0_1 = arith.constant 0 : index
    %c0_2 = arith.constant 0 : index
    %1 = vector.load %arg3[%c0_1, %c0_2] : memref<128x512xbf16, #tpu.memory_space<vmem>>, vector<128x512xbf16>
    %cst = arith.constant dense<0.000000e+00> : vector<8x512xf32>
    %2 = tpu.matmul %0, %1, %cst {dimension_numbers = #tpu.dot_dimension_numbers<[1], [0], [0], [1], [0, 0, 1, 1], [], []>} : vector<8x128xbf16>, vector<128x512xbf16>, vector<8x512xf32> -> vector<8x512xf32>
    %c0_i32 = arith.constant 0 : i32
    %3 = arith.cmpi eq, %arg1, %c0_i32 : i32
    %4 = arith.extui %3 : i1 to i32
    %c0_i32_3 = arith.constant 0 : i32
    %5 = arith.cmpi ne, %4, %c0_i32_3 : i32
    scf.if %5 {
      %c0_6 = arith.constant 0 : index
      %c0_7 = arith.constant 0 : index
      %9 = vector.load %arg4[%c0_6, %c0_7] : memref<8x512xf32, #tpu.memory_space<vmem>>, vector<8x512xf32>
      tpu.vector_store %arg4[%c0_6, %c0_7], %2 {strides = array<i32>} : memref<8x512xf32, #tpu.memory_space<vmem>>, vector<8x512xf32>,
    } else {
    }
    %c0_i32_4 = arith.constant 0 : i32
    %6 = arith.cmpi sgt, %arg1, %c0_i32_4 : i32
    %7 = arith.extui %6 : i1 to i32
    %c0_i32_5 = arith.constant 0 : i32
    %8 = arith.cmpi ne, %7, %c0_i32_5 : i32
    scf.if %8 {
      %c0_6 = arith.constant 0 : index
      %c0_7 = arith.constant 0 : index
      %9 = vector.load %arg4[%c0_6, %c0_7] : memref<8x512xf32, #tpu.memory_space<vmem>>, vector<8x512xf32>
      %10 = arith.addf %9, %2 : vector<8x512xf32>
      %c0_8 = arith.constant 0 : index
      %c0_9 = arith.constant 0 : index
      %11 = vector.load %arg4[%c0_8, %c0_9] : memref<8x512xf32, #tpu.memory_space<vmem>>, vector<8x512xf32>
      tpu.vector_store %arg4[%c0_8, %c0_9], %10 {strides = array<i32>} : memref<8x512xf32, #tpu.memory_space<vmem>>, vector<8x512xf32>,
    } else {
    }
    return
  }
  func.func @transform_0(%arg0: i32, %arg1: i32) -> (i32, i32) {
    %c0_i32 = arith.constant 0 : i32
    %c0_i32_0 = arith.constant 0 : i32
    return %c0_i32, %arg1 : i32, i32
  }
  func.func @transform_1(%arg0: i32, %arg1: i32) -> (i32, i32) {
    %c0_i32 = arith.constant 0 : i32
    return %arg1, %arg0 : i32, i32
  }
  func.func @transform_2(%arg0: i32, %arg1: i32) -> (i32, i32) {
    %c0_i32 = arith.constant 0 : i32
    %c0_i32_0 = arith.constant 0 : i32
    return %c0_i32, %arg0 : i32, i32
  }
}

</mosaic_0001>

<llo_original>
// kernel: voxel2sd_forward.3
$region0: #{voxel2sd_forward.3}
  #allocation0 [shape = 'u32[]', space=smem, size = 0x4, offset = 0x4, fixed_abs, tag = 'smem constant byte address 0x4 - core index']
  #allocation1 [shape = 'u32[144,128]{1,0:T(1,128)}', space=vmem, size = 0x12000, scoped, tag = 'internal scratch']
  %s0 = inlined_call_operand.vmem [shape: bf16[8,128], index: 0, kind: input, shape index: {}]
  %s1 = inlined_call_operand.hbm [shape: bf16[128,256], index: 1, kind: input, shape index: {}]
  %s2 = inlined_call_operand.vmem [shape: f32[8,256], index: 2, kind: output, shape index: {}]
  %s3 = sld [smem:[#allocation0]]
  $region45: #{voxel2sd_forward.3} parent=0
    _
  %s5 = ssub.s32 1, %s3
  %s6 = scalar_select 0, %s5, %s3
  $region1: #{voxel2sd_forward.3} parent=0
    #allocation2 [shape = 'u8[65536]{0}', space=vmem, size = 0x10000, scoped, tag = 'input window, operand 1']
    #allocation3 [shape = 's32[2]{0}', space=sflag, size = 0x8, scoped, tag = 'scoped memory for voxel2sd_forward.3']
    %7 = vsyncpa [#allocation3], 0
    %s8 = scalar_lea.sflag [#allocation3], 1
    %9 = vsyncpa %s8, 0
    loop: start=0, step=1, limit=4
    $region2: #{voxel2sd_forward.3} parent=1 // loop_pre_header
      _
    $region3: #{voxel2sd_forward.3} parent=1 // loop_header
      %s11 = sphi 0, %s15
      %p12 = scmp.ge.s32.totalorder %s11, 4
      %s19 = sphi 0, %s19
      %s21 = sphi 0, %s19
      %s22 = sphi 0, %s21
      %s36 = sphi 0, %s22
      %s42 = sphi 0, %s44
      %s45 = sphi 0, %s42
      %s46 = sphi 0, %s45
      %s62 = sphi 0, %s46
      %s68 = sphi 0, %s70
      %s71 = sphi 0, %s68
      %s72 = sphi 0, %s71
      %s88 = sphi 0, %s72
    $region4: #{voxel2sd_forward.3} parent=1 // loop_header_branch
      %14 = sbr.rel (%p12) target = $region8
    $region5: #{voxel2sd_forward.3} parent=1 // loop_body
      %s16 = ssub.s32 %s11, 1
      %s17 = ssub.s32 %s11, 2
      %s18 = sadd.s32 %s11, 1
      %s20 = sadd.s32 %s19, 1
      %p23 = scmp.eq.s32.totalorder %s11, 1
      %p24 = scmp.ne.s32.totalorder %s19, %s21
      %p25 = scmp.eq.s32.totalorder %s11, 0
      %p26 = por %p24, %p25
      %p27 = scmp.ne.s32.totalorder %s19, %s21
      %p28 = scmp.eq.s32.totalorder %s16, 1
      %p29 = por %p27, %p28
      %p30 = scmp.ne.s32.totalorder %s21, %s22
      %p31 = scmp.eq.s32.totalorder %s16, 0
      %p32 = por %p30, %p31
      %p33 = scmp.ne.s32.totalorder %s21, %s22
      %p34 = scmp.eq.s32.totalorder %s17, 1
      %p35 = por %p33, %p34
      %p37 = scmp.ne.s32.totalorder %s22, %s36
      %p38 = scmp.eq.s32.totalorder %s17, 0
      %p39 = por %p37, %p38
      %s40 = ssub.s32 %s11, %s18
      %p41 = scmp.eq.s32.totalorder %s40, 0
      %s43 = sadd.s32 %s42, 1
      %s44 = scalar_select %p41, %s42, %s43
      %p47 = pneg %p41
      %p48 = scmp.eq.s32.totalorder %s11, 1
      %p49 = por %p47, %p48
      %p50 = scmp.ne.s32.totalorder %s42, %s45
      %p51 = scmp.eq.s32.totalorder %s11, 0
      %p52 = por %p50, %p51
      %p53 = scmp.ne.s32.totalorder %s42, %s45
      %p54 = scmp.eq.s32.totalorder %s16, 1
      %p55 = por %p53, %p54
      %p56 = scmp.ne.s32.totalorder %s45, %s46
      %p57 = scmp.eq.s32.totalorder %s16, 0
      %p58 = por %p56, %p57
      %p59 = scmp.ne.s32.totalorder %s45, %s46
      %p60 = scmp.eq.s32.totalorder %s17, 1
      %p61 = por %p59, %p60
      %p63 = scmp.ne.s32.totalorder %s46, %s62
      %p64 = scmp.eq.s32.totalorder %s17, 0
      %p65 = por %p63, %p64
      %s66 = ssub.s32 %s11, %s18
      %p67 = scmp.eq.s32.totalorder %s66, 0
      %s69 = sadd.s32 %s68, 1
      %s70 = scalar_select %p67, %s68, %s69
      %p73 = pneg %p67
      %p74 = scmp.eq.s32.totalorder %s11, 1
      %p75 = por %p73, %p74
      %p76 = scmp.ne.s32.totalorder %s68, %s71
      %p77 = scmp.eq.s32.totalorder %s11, 0
      %p78 = por %p76, %p77
      %p79 = scmp.ne.s32.totalorder %s68, %s71
      %p80 = scmp.eq.s32.totalorder %s16, 1
      %p81 = por %p79, %p80
      %p82 = scmp.ne.s32.totalorder %s71, %s72
      %p83 = scmp.eq.s32.totalorder %s16, 0
      %p84 = por %p82, %p83
      %p85 = scmp.ne.s32.totalorder %s71, %s72
      %p86 = scmp.eq.s32.totalorder %s17, 1
      %p87 = por %p85, %p86
      %p89 = scmp.ne.s32.totalorder %s72, %s88
      %p90 = scmp.eq.s32.totalorder %s17, 0
      %p91 = por %p89, %p90
      %p92 = scmp.le.s32.totalorder 1, %s11
      %p93 = scmp.lt.s32.totalorder %s11, 3
      %p94 = pnand %p92, %p93
      %p95 = pneg %p94
      // Predicated region
      $region9: #{voxel2sd_forward.3} parent=5 // pred_check
        _
      $region10: #{voxel2sd_forward.3} parent=5 // pred_check_branch
        %97 = sbr.rel (%p94) target = $region12
      $region11: #{voxel2sd_forward.3} parent=5 // pred_region
        %s98 = ssub.s32 %s11, 1
        // Predicated region
        $region13: #{voxel2sd_forward.3} parent=11 // pred_check
          %p99 = pneg %p32
        $region14: #{voxel2sd_forward.3} parent=11 // pred_check_branch
          %101 = sbr.rel (%p99) target = $region16
        $region15: #{voxel2sd_forward.3} parent=11 // pred_region
          _
        $region16: #{voxel2sd_forward.3} parent=11 // pred_fallthru
          _
      $region12: #{voxel2sd_forward.3} parent=5 // pred_fallthru
        _
      %p102 = scmp.lt.s32.totalorder %s11, 2
      // Predicated region
      $region17: #{voxel2sd_forward.3} parent=5 // pred_check
        %p103 = pneg %p102
      $region18: #{voxel2sd_forward.3} parent=5 // pred_check_branch
        %105 = sbr.rel (%p103) target = $region20
      $region19: #{voxel2sd_forward.3} parent=5 // pred_region
        // Predicated region
        $region21: #{voxel2sd_forward.3} parent=19 // pred_check
          %p106 = pneg %p52
        $region22: #{voxel2sd_forward.3} parent=19 // pred_check_branch
          %108 = sbr.rel (%p106) target = $region24
        $region23: #{voxel2sd_forward.3} parent=19 // pred_region
          %s109 = sand.u32 %s42, 1
          %s110 = scalar_lea.sflag [#allocation3], %s109
          %s111 = sand.u32 %s42, 1
          %s112 = smul.addr %s111, 64
          %s113 = scalar_lea.vmem [#allocation2], %s112
          %s115 = ssub.s32 1024, 1024
          %116 = vsyncadd %s110, %s115
          %s117 = smul.addr %s11, 64
          %s118 = scalar_lea.hbm %s1, %s117
          %s119 = sshll.u32 %s113, 4
          %s120 = int_to_ptr.vmem [resolvable:$true] %s119
          %125 = dma.hbm_to_vmem [thread:$0]  %s118, 1024, %s120, %s110, 128, 64, 4
        $region24: #{voxel2sd_forward.3} parent=19 // pred_fallthru
          _
      $region20: #{voxel2sd_forward.3} parent=5 // pred_fallthru
        _
      %p126 = scmp.le.s32.totalorder 1, %s11
      %p127 = scmp.lt.s32.totalorder %s11, 3
      %p128 = pnand %p126, %p127
      %p129 = pneg %p128
      // Predicated region
      $region25: #{voxel2sd_forward.3} parent=5 // pred_check
        _
      $region26: #{voxel2sd_forward.3} parent=5 // pred_check_branch
        %131 = sbr.rel (%p128) target = $region28
      $region27: #{voxel2sd_forward.3} parent=5 // pred_region
        %s132 = ssub.s32 %s11, 1
        %s133 = sand.u32 %s45, 1
        %s134 = scalar_lea.sflag [#allocation3], %s133
        %s135 = sand.u32 %s45, 1
        %s136 = smul.addr %s135, 64
        %s137 = scalar_lea.vmem [#allocation2], %s136
        // Predicated region
        $region29: #{voxel2sd_forward.3} parent=27 // pred_check
          %p138 = pneg %p58
        $region30: #{voxel2sd_forward.3} parent=27 // pred_check_branch
          %140 = sbr.rel (%p138) target = $region32
        $region31: #{voxel2sd_forward.3} parent=27 // pred_region
          %141 = dma.done %s134, 1024
        $region32: #{voxel2sd_forward.3} parent=27 // pred_fallthru
          _
        %p142 = pneg %p32
        %p143 = pneg %p29
        %s144 = sand.u32 %s45, 1
        %s145 = scalar_lea.sflag [#allocation3], %s144
        %s146 = sand.u32 %s45, 1
        %s147 = smul.addr %s146, 64
        %s148 = scalar_lea.vmem [#allocation2], %s147
        %p149 = pneg %p58
        %p150 = pneg %p55
        %p151 = pneg %p84
        %p152 = pneg %p81
        %p153 = scmp.lt.s32.totalorder %s16, 1
        %s154 = scalar_select %p153, %s16, 1
        %s155 = smul.addr %s154, 8
        %s156 = scalar_lea.vmem %s2, %s155
        %p157 = scmp.lt.s32.totalorder %s16, 1
        %s158 = scalar_select %p157, %s16, 1
        %s159 = smul.addr %s158, 8
        %s160 = scalar_lea.vmem %s2, %s159
        %v162 = vld [vmem:[%s0] sm:$0xf]
        %v163 = vld [vmem:[%s137] sm:$0xf]
        %v164 = vld [vmem:[%s137 + $0x4] sm:$0xf]
        %v165 = vld [vmem:[%s137 + $0x8] sm:$0xf]
        %v166 = vld [vmem:[%s137 + $0xc] sm:$0xf]
        %v167 = vld [vmem:[%s137 + $0x10] sm:$0xf]
        %v168 = vld [vmem:[%s137 + $0x14] sm:$0xf]
        %v169 = vld [vmem:[%s137 + $0x18] sm:$0xf]
        %v170 = vld [vmem:[%s137 + $0x1c] sm:$0xf]
        %v171 = vld [vmem:[%s137 + $0x20] sm:$0xf]
        %v172 = vld [vmem:[%s137 + $0x24] sm:$0xf]
        %v173 = vld [vmem:[%s137 + $0x28] sm:$0xf]
        %v174 = vld [vmem:[%s137 + $0x2c] sm:$0xf]
        %v175 = vld [vmem:[%s137 + $0x30] sm:$0xf]
        %v176 = vld [vmem:[%s137 + $0x34] sm:$0xf]
        %v177 = vld [vmem:[%s137 + $0x38] sm:$0xf]
        %v178 = vld [vmem:[%s137 + $0x3c] sm:$0xf]
        %v195 = vunpack.c.l.b16 %v163
        %v196 = vunpack.c.l.b16 %v164
        %v197 = vunpack.c.l.b16 %v165
        %v198 = vunpack.c.l.b16 %v166
        %v199 = vunpack.c.l.b16 %v167
        %v200 = vunpack.c.l.b16 %v168
        %v201 = vunpack.c.l.b16 %v169
        %v202 = vunpack.c.l.b16 %v170
        %v203 = vunpack.c.l.b16 %v171
        %v204 = vunpack.c.l.b16 %v172
        %v205 = vunpack.c.l.b16 %v173
        %v206 = vunpack.c.l.b16 %v174
        %v207 = vunpack.c.l.b16 %v175
        %v208 = vunpack.c.l.b16 %v176
        %v209 = vunpack.c.l.b16 %v177
        %v210 = vunpack.c.l.b16 %v178
        %v211 = vpack.c.b16 %v196, %v195
        %v212 = vpack.c.b16 %v198, %v197
        %v213 = vpack.c.b16 %v200, %v199
        %v214 = vpack.c.b16 %v202, %v201
        %v215 = vpack.c.b16 %v204, %v203
        %v216 = vpack.c.b16 %v206, %v205
        %v217 = vpack.c.b16 %v208, %v207
        %v218 = vpack.c.b16 %v210, %v209
        %227 = vmatprep.subr.bf16.mxu0 0
        %228 = vmatpush1.bf16.msra.mxu0 %v211
        %229 = vmatprep.subr.bf16.mxu0 0
        %230 = vmatpush1.bf16.msra.mxu0 %v212
        %231 = vmatprep.subr.bf16.mxu0 0
        %232 = vmatpush1.bf16.msra.mxu0 %v213
        %233 = vmatprep.subr.bf16.mxu0 0
        %234 = vmatpush1.bf16.msra.mxu0 %v214
        %235 = vmatprep.subr.bf16.mxu0 0
        %236 = vmatpush1.bf16.msra.mxu0 %v215
        %237 = vmatprep.subr.bf16.mxu0 0
        %238 = vmatpush1.bf16.msra.mxu0 %v216
        %239 = vmatprep.subr.bf16.mxu0 0
        %240 = vmatpush1.bf16.msra.mxu0 %v217
        %241 = vmatprep.subr.bf16.mxu0 0
        %242 = vmatpush1.bf16.msra.mxu0 %v218
        %243 = vmatprep.subr.bf16.mxu0 0
        %244 = vmatpush1.bf16.msra.mxu0 0
        %245 = vmatprep.subr.bf16.mxu0 0
        %246 = vmatpush1.bf16.msra.mxu0 0
        %247 = vmatprep.subr.bf16.mxu0 0
        %248 = vmatpush1.bf16.msra.mxu0 0
        %249 = vmatprep.subr.bf16.mxu0 0
        %250 = vmatpush1.bf16.msra.mxu0 0
        %251 = vmatprep.subr.bf16.mxu0 0
        %252 = vmatpush1.bf16.msra.mxu0 0
        %253 = vmatprep.subr.bf16.mxu0 0
        %254 = vmatpush1.bf16.msra.mxu0 0
        %255 = vmatprep.subr.bf16.mxu0 0
        %256 = vmatpush1.bf16.msra.mxu0 0
        %257 = vmatprep.subr.bf16.mxu0 0
        %258 = vmatpush1.bf16.msra.mxu0 0
        %259 = vmatprep.mubr.bf16.mxu0 0
        %260 = vmatmul.mubr.bf16.gmra.mrb[0].mxu0 %v162
        %v261 = vpop.f32.mrb[0].mxu0
        %v262 = vadd.f32 0.0, %v261
        %v263 = vpop.f32.mrb[0].mxu0
        %v264 = vpop.f32.mrb[0].mxu0
        %v265 = vpop.f32.mrb[0].mxu0
        %266 = vdwg.mxu0
        %267 = vst [vmem:[%s160] sm:$0xff] %v262
        %p268 = scmp.lt.s32.totalorder %s16, 1
        %s269 = scalar_select %p268, %s16, 1
        %s270 = smul.addr %s269, 8
        %s271 = scalar_lea.vmem %s2, %s270
        // Predicated region
        $region33: #{voxel2sd_forward.3} parent=27 // pred_check
          %p272 = pneg %p81
        $region34: #{voxel2sd_forward.3} parent=27 // pred_check_branch
          %274 = sbr.rel (%p272) target = $region36
        $region35: #{voxel2sd_forward.3} parent=27 // pred_region
          _
        $region36: #{voxel2sd_forward.3} parent=27 // pred_fallthru
          _
      $region28: #{voxel2sd_forward.3} parent=5 // pred_fallthru
        _
      %p275 = scmp.le.s32.totalorder 2, %s11
      // Predicated region
      $region37: #{voxel2sd_forward.3} parent=5 // pred_check
        %p276 = pneg %p275
      $region38: #{voxel2sd_forward.3} parent=5 // pred_check_branch
        %278 = sbr.rel (%p276) target = $region40
      $region39: #{voxel2sd_forward.3} parent=5 // pred_region
        %s279 = ssub.s32 %s11, 2
        // Predicated region
        $region41: #{voxel2sd_forward.3} parent=39 // pred_check
          %p280 = pneg %p87
        $region42: #{voxel2sd_forward.3} parent=39 // pred_check_branch
          %282 = sbr.rel (%p280) target = $region44
        $region43: #{voxel2sd_forward.3} parent=39 // pred_region
          %p283 = scmp.lt.s32.totalorder %s17, 1
          %s284 = scalar_select %p283, %s17, 1
          %s285 = smul.addr %s284, 8
          %s286 = scalar_lea.vmem %s2, %s285
        $region44: #{voxel2sd_forward.3} parent=39 // pred_fallthru
          _
      $region40: #{voxel2sd_forward.3} parent=5 // pred_fallthru
        _
    $region6: #{voxel2sd_forward.3} parent=1 // loop_footer
      %s15 = sadd.s32 1, %s11
    $region7: #{voxel2sd_forward.3} parent=1 // loop_footer_branch
      %10 = sbr.rel target = $region3
    $region8: #{voxel2sd_forward.3} parent=1 // loop_exit
      _
    %287 = vsyncpa [#allocation3], 1
    %s288 = scalar_lea.sflag [#allocation3], 1
    %289 = vsyncpa %s288, 1

// kernel: voxel2sd_forward.4
$region0: #{voxel2sd_forward.4}
  #allocation0 [shape = 'u32[]', space=smem, size = 0x4, offset = 0x4, fixed_abs, tag = 'smem constant byte address 0x4 - core index']
  #allocation1 [shape = 'u32[144,128]{1,0:T(1,128)}', space=vmem, size = 0x12000, scoped, tag = 'internal scratch']
  #allocation2 [shape = 'f32[2,8,128]{2,1,0:T(8,128)}', space=vmem, size = 0x2000, scoped, tag = 'scratch operand']
  #allocation3 [shape = 'f32[8,256]{1,0:T(8,128)}', space=vmem, size = 0x2000, scoped, tag = 'scratch operand']
  %s0 = inlined_call_operand.vmem [shape: f32[8,256], index: 0, kind: input, shape index: {}]
  %s1 = inlined_call_operand.hbm [shape: f32[1,256], index: 1, kind: input, shape index: {}]
  %s2 = inlined_call_operand.hbm [shape: f32[1,256], index: 2, kind: input, shape index: {}]
  %s3 = inlined_call_operand.hbm [shape: bf16[2,256,256], index: 3, kind: input, shape index: {}]
  %s4 = inlined_call_operand.hbm [shape: f32[2,1,256], index: 4, kind: input, shape index: {}]
  %s5 = inlined_call_operand.hbm [shape: f32[2,1,256], index: 5, kind: input, shape index: {}]
  %s6 = inlined_call_operand.vmem [shape: bf16[8,256], index: 6, kind: output, shape index: {}]
  %s7 = sld [smem:[#allocation0]]
  $region97: #{voxel2sd_forward.4} parent=0
    _
  %s9 = ssub.s32 1, %s7
  %s10 = scalar_select 0, %s9, %s7
  $region1: #{voxel2sd_forward.4} parent=0
    #allocation4 [shape = 'u8[1024]{0}', space=vmem, size = 0x400, scoped, tag = 'input window, operand 1, single buffered']
    #allocation5 [shape = 's32[2]{0}', space=sflag, size = 0x8, scoped, tag = 'scoped memory for voxel2sd_forward.4']
    #allocation6 [shape = 'u8[1024]{0}', space=vmem, size = 0x400, scoped, tag = 'input window, operand 2, single buffered']
    #allocation7 [shape = 's32[1]{0}', space=sflag, size = 0x4, scoped, tag = 'scoped memory for voxel2sd_forward.4']
    #allocation8 [shape = 'u8[131072]{0}', space=vmem, size = 0x20000, scoped, tag = 'input window, operand 3']
    #allocation9 [shape = 'u8[2048]{0}', space=vmem, size = 0x800, scoped, tag = 'input window, operand 4']
    #allocation10 [shape = 'u8[2048]{0}', space=vmem, size = 0x800, scoped, tag = 'input window, operand 5']
    %11 = vsyncpa [#allocation5], 0
    %12 = vsyncpa [#allocation7], 0
    loop: start=0, step=1, limit=6
    $region2: #{voxel2sd_forward.4} parent=1 // loop_pre_header
      _
    $region3: #{voxel2sd_forward.4} parent=1 // loop_header
      %s14 = sphi 0, %s18
      %p15 = scmp.ge.s32.totalorder %s14, 6
      %s21 = sphi 0, %s33
      %s22 = sphi 0, %s29
      %s23 = sphi 0, %s21
      %s24 = sphi 0, %s22
      %s25 = sphi 0, %s23
      %s26 = sphi 0, %s24
      %s34 = sphi 0, %s34
      %s36 = sphi 0, %s34
      %s37 = sphi 0, %s36
      %s51 = sphi 0, %s37
      %s55 = sphi 0, %s55
      %s57 = sphi 0, %s55
      %s58 = sphi 0, %s57
      %s72 = sphi 0, %s58
      %s76 = sphi 0, %s76
      %s78 = sphi 0, %s76
      %s79 = sphi 0, %s78
      %s93 = sphi 0, %s79
      %s101 = sphi 0, %s103
      %s104 = sphi 0, %s101
      %s105 = sphi 0, %s104
      %s121 = sphi 0, %s105
      %s127 = sphi 0, %s129
      %s130 = sphi 0, %s127
      %s131 = sphi 0, %s130
      %s147 = sphi 0, %s131
      %s153 = sphi 0, %s155
      %s156 = sphi 0, %s153
      %s157 = sphi 0, %s156
      %s173 = sphi 0, %s157
      %s177 = sphi 0, %s177
      %s179 = sphi 0, %s177
      %s180 = sphi 0, %s179
      %s194 = sphi 0, %s180
    $region4: #{voxel2sd_forward.4} parent=1 // loop_header_branch
      %17 = sbr.rel (%p15) target = $region8
    $region5: #{voxel2sd_forward.4} parent=1 // loop_body
      %s19 = ssub.s32 %s14, 1
      %s20 = ssub.s32 %s14, 2
      %s27 = sadd.s32 1, %s22
      %p28 = scmp.ge.s32.totalorder %s27, 2
      %s29 = scalar_select %p28, 0, %s27
      %s30 = sadd.s32 1, %s21
      %s31 = scalar_select %p28, %s30, %s21
      %p32 = scmp.ge.s32.totalorder %s31, 2
      %s33 = scalar_select %p32, 0, %s31
      %s35 = sadd.s32 %s34, 1
      %p38 = scmp.eq.s32.totalorder %s14, 3
      %p39 = scmp.ne.s32.totalorder %s34, %s36
      %p40 = scmp.eq.s32.totalorder %s14, 0
      %p41 = por %p39, %p40
      %p42 = scmp.ne.s32.totalorder %s34, %s36
      %p43 = scmp.eq.s32.totalorder %s19, 3
      %p44 = por %p42, %p43
      %p45 = scmp.ne.s32.totalorder %s36, %s37
      %p46 = scmp.eq.s32.totalorder %s19, 0
      %p47 = por %p45, %p46
      %p48 = scmp.ne.s32.totalorder %s36, %s37
      %p49 = scmp.eq.s32.totalorder %s20, 3
      %p50 = por %p48, %p49
      %p52 = scmp.ne.s32.totalorder %s37, %s51
      %p53 = scmp.eq.s32.totalorder %s20, 0
      %p54 = por %p52, %p53
      %s56 = sadd.s32 %s55, 1
      %p59 = scmp.eq.s32.totalorder %s14, 3
      %p60 = scmp.ne.s32.totalorder %s55, %s57
      %p61 = scmp.eq.s32.totalorder %s14, 0
      %p62 = por %p60, %p61
      %p63 = scmp.ne.s32.totalorder %s55, %s57
      %p64 = scmp.eq.s32.totalorder %s19, 3
      %p65 = por %p63, %p64
      %p66 = scmp.ne.s32.totalorder %s57, %s58
      %p67 = scmp.eq.s32.totalorder %s19, 0
      %p68 = por %p66, %p67
      %p69 = scmp.ne.s32.totalorder %s57, %s58
      %p70 = scmp.eq.s32.totalorder %s20, 3
      %p71 = por %p69, %p70
      %p73 = scmp.ne.s32.totalorder %s58, %s72
      %p74 = scmp.eq.s32.totalorder %s20, 0
      %p75 = por %p73, %p74
      %s77 = sadd.s32 %s76, 1
      %p80 = scmp.eq.s32.totalorder %s14, 3
      %p81 = scmp.ne.s32.totalorder %s76, %s78
      %p82 = scmp.eq.s32.totalorder %s14, 0
      %p83 = por %p81, %p82
      %p84 = scmp.ne.s32.totalorder %s76, %s78
      %p85 = scmp.eq.s32.totalorder %s19, 3
      %p86 = por %p84, %p85
      %p87 = scmp.ne.s32.totalorder %s78, %s79
      %p88 = scmp.eq.s32.totalorder %s19, 0
      %p89 = por %p87, %p88
      %p90 = scmp.ne.s32.totalorder %s78, %s79
      %p91 = scmp.eq.s32.totalorder %s20, 3
      %p92 = por %p90, %p91
      %p94 = scmp.ne.s32.totalorder %s79, %s93
      %p95 = scmp.eq.s32.totalorder %s20, 0
      %p96 = por %p94, %p95
      %s97 = ssub.s32 %s21, %s33
      %s98 = ssub.s32 %s22, %s29
      %s99 = sor.u32 %s97, %s98
      %p100 = scmp.eq.s32.totalorder %s99, 0
      %s102 = sadd.s32 %s101, 1
      %s103 = scalar_select %p100, %s101, %s102
      %p106 = pneg %p100
      %p107 = scmp.eq.s32.totalorder %s14, 3
      %p108 = por %p106, %p107
      %p109 = scmp.ne.s32.totalorder %s101, %s104
      %p110 = scmp.eq.s32.totalorder %s14, 0
      %p111 = por %p109, %p110
      %p112 = scmp.ne.s32.totalorder %s101, %s104
      %p113 = scmp.eq.s32.totalorder %s19, 3
      %p114 = por %p112, %p113
      %p115 = scmp.ne.s32.totalorder %s104, %s105
      %p116 = scmp.eq.s32.totalorder %s19, 0
      %p117 = por %p115, %p116
      %p118 = scmp.ne.s32.totalorder %s104, %s105
      %p119 = scmp.eq.s32.totalorder %s20, 3
      %p120 = por %p118, %p119
      %p122 = scmp.ne.s32.totalorder %s105, %s121
      %p123 = scmp.eq.s32.totalorder %s20, 0
      %p124 = por %p122, %p123
      %s125 = ssub.s32 %s21, %s33
      %p126 = scmp.eq.s32.totalorder %s125, 0
      %s128 = sadd.s32 %s127, 1
      %s129 = scalar_select %p126, %s127, %s128
      %p132 = pneg %p126
      %p133 = scmp.eq.s32.totalorder %s14, 3
      %p134 = por %p132, %p133
      %p135 = scmp.ne.s32.totalorder %s127, %s130
      %p136 = scmp.eq.s32.totalorder %s14, 0
      %p137 = por %p135, %p136
      %p138 = scmp.ne.s32.totalorder %s127, %s130
      %p139 = scmp.eq.s32.totalorder %s19, 3
      %p140 = por %p138, %p139
      %p141 = scmp.ne.s32.totalorder %s130, %s131
      %p142 = scmp.eq.s32.totalorder %s19, 0
      %p143 = por %p141, %p142
      %p144 = scmp.ne.s32.totalorder %s130, %s131
      %p145 = scmp.eq.s32.totalorder %s20, 3
      %p146 = por %p144, %p145
      %p148 = scmp.ne.s32.totalorder %s131, %s147
      %p149 = scmp.eq.s32.totalorder %s20, 0
      %p150 = por %p148, %p149
      %s151 = ssub.s32 %s21, %s33
      %p152 = scmp.eq.s32.totalorder %s151, 0
      %s154 = sadd.s32 %s153, 1
      %s155 = scalar_select %p152, %s153, %s154
      %p158 = pneg %p152
      %p159 = scmp.eq.s32.totalorder %s14, 3
      %p160 = por %p158, %p159
      %p161 = scmp.ne.s32.totalorder %s153, %s156
      %p162 = scmp.eq.s32.totalorder %s14, 0
      %p163 = por %p161, %p162
      %p164 = scmp.ne.s32.totalorder %s153, %s156
      %p165 = scmp.eq.s32.totalorder %s19, 3
      %p166 = por %p164, %p165
      %p167 = scmp.ne.s32.totalorder %s156, %s157
      %p168 = scmp.eq.s32.totalorder %s19, 0
      %p169 = por %p167, %p168
      %p170 = scmp.ne.s32.totalorder %s156, %s157
      %p171 = scmp.eq.s32.totalorder %s20, 3
      %p172 = por %p170, %p171
      %p174 = scmp.ne.s32.totalorder %s157, %s173
      %p175 = scmp.eq.s32.totalorder %s20, 0
      %p176 = por %p174, %p175
      %s178 = sadd.s32 %s177, 1
      %p181 = scmp.eq.s32.totalorder %s14, 3
      %p182 = scmp.ne.s32.totalorder %s177, %s179
      %p183 = scmp.eq.s32.totalorder %s14, 0
      %p184 = por %p182, %p183
      %p185 = scmp.ne.s32.totalorder %s177, %s179
      %p186 = scmp.eq.s32.totalorder %s19, 3
      %p187 = por %p185, %p186
      %p188 = scmp.ne.s32.totalorder %s179, %s180
      %p189 = scmp.eq.s32.totalorder %s19, 0
      %p190 = por %p188, %p189
      %p191 = scmp.ne.s32.totalorder %s179, %s180
      %p192 = scmp.eq.s32.totalorder %s20, 3
      %p193 = por %p191, %p192
      %p195 = scmp.ne.s32.totalorder %s180, %s194
      %p196 = scmp.eq.s32.totalorder %s20, 0
      %p197 = por %p195, %p196
      %p198 = scmp.le.s32.totalorder 1, %s14
      %p199 = scmp.lt.s32.totalorder %s14, 5
      %p200 = pnand %p198, %p199
      %p201 = pneg %p200
      // Predicated region
      $region9: #{voxel2sd_forward.4} parent=5 // pred_check
        _
      $region10: #{voxel2sd_forward.4} parent=5 // pred_check_branch
        %203 = sbr.rel (%p200) target = $region12
      $region11: #{voxel2sd_forward.4} parent=5 // pred_region
        %s204 = ssub.s32 %s14, 1
        // Predicated region
        $region13: #{voxel2sd_forward.4} parent=11 // pred_check
          %p205 = pneg %p47
        $region14: #{voxel2sd_forward.4} parent=11 // pred_check_branch
          %207 = sbr.rel (%p205) target = $region16
        $region15: #{voxel2sd_forward.4} parent=11 // pred_region
          _
        $region16: #{voxel2sd_forward.4} parent=11 // pred_fallthru
          _
        // Predicated region
        $region17: #{voxel2sd_forward.4} parent=11 // pred_check
          %p208 = pneg %p68
        $region18: #{voxel2sd_forward.4} parent=11 // pred_check_branch
          %210 = sbr.rel (%p208) target = $region20
        $region19: #{voxel2sd_forward.4} parent=11 // pred_region
          %s212 = ssub.s32 32, 32
          %213 = vsyncadd [#allocation5], %s212
          %s215 = sshll.u32 [#allocation4], 4
          %s216 = int_to_ptr.vmem [resolvable:$true] %s215
          %218 = dma.hbm_to_vmem [thread:$0]  %s1, 32, %s216, [#allocation5]
        $region20: #{voxel2sd_forward.4} parent=11 // pred_fallthru
          _
        // Predicated region
        $region21: #{voxel2sd_forward.4} parent=11 // pred_check
          %p219 = pneg %p89
        $region22: #{voxel2sd_forward.4} parent=11 // pred_check_branch
          %221 = sbr.rel (%p219) target = $region24
        $region23: #{voxel2sd_forward.4} parent=11 // pred_region
          %s223 = ssub.s32 32, 32
          %224 = vsyncadd [#allocation7], %s223
          %s226 = sshll.u32 [#allocation6], 4
          %s227 = int_to_ptr.vmem [resolvable:$true] %s226
          %229 = dma.hbm_to_vmem [thread:$0]  %s2, 32, %s227, [#allocation7]
        $region24: #{voxel2sd_forward.4} parent=11 // pred_fallthru
          _
      $region12: #{voxel2sd_forward.4} parent=5 // pred_fallthru
        _
      %p230 = scmp.lt.s32.totalorder %s14, 4
      // Predicated region
      $region25: #{voxel2sd_forward.4} parent=5 // pred_check
        %p231 = pneg %p230
      $region26: #{voxel2sd_forward.4} parent=5 // pred_check_branch
        %233 = sbr.rel (%p231) target = $region28
      $region27: #{voxel2sd_forward.4} parent=5 // pred_region
        // Predicated region
        $region29: #{voxel2sd_forward.4} parent=27 // pred_check
          %p234 = pneg %p111
        $region30: #{voxel2sd_forward.4} parent=27 // pred_check_branch
          %236 = sbr.rel (%p234) target = $region32
        $region31: #{voxel2sd_forward.4} parent=27 // pred_region
          %s237 = sand.u32 %s14, 1
          %s238 = scalar_lea.sflag [#allocation5], %s237
          %s239 = sand.u32 %s101, 1
          %s240 = smul.addr %s239, 128
          %s241 = scalar_lea.vmem [#allocation8], %s240
          %s242 = smul.u32 16, %s22
          %s244 = ssub.s32 2048, 2048
          %245 = vsyncadd %s238, %s244
          %s246 = smul.addr %s242, 2
          %s247 = smul.addr %s21, 64
          %s248 = sadd.s32 %s246, %s247
          %s249 = smul.addr %s248, 64
          %s250 = scalar_lea.hbm %s3, %s249
          %s251 = sshll.u32 %s241, 4
          %s252 = int_to_ptr.vmem [resolvable:$true] %s251
          %257 = dma.hbm_to_vmem [thread:$0]  %s250, 2048, %s252, %s238, 128, 128, 8
        $region32: #{voxel2sd_forward.4} parent=27 // pred_fallthru
          _
        // Predicated region
        $region33: #{voxel2sd_forward.4} parent=27 // pred_check
          %p258 = pneg %p137
        $region34: #{voxel2sd_forward.4} parent=27 // pred_check_branch
          %260 = sbr.rel (%p258) target = $region36
        $region35: #{voxel2sd_forward.4} parent=27 // pred_region
          %s261 = sand.u32 %s14, 1
          %s262 = scalar_lea.sflag [#allocation5], %s261
          %s263 = sand.u32 %s127, 1
          %s264 = smul.addr %s263, 2
          %s265 = scalar_lea.vmem [#allocation9], %s264
          %s267 = ssub.s32 32, 32
          %268 = vsyncadd %s262, %s267
          %s269 = smul.addr %s21, 2
          %s270 = smul.addr %s269, 16
          %s271 = scalar_lea.hbm %s4, %s270
          %s273 = sshll.u32 %s265, 4
          %s274 = int_to_ptr.vmem [resolvable:$true] %s273
          %276 = dma.hbm_to_vmem [thread:$0]  %s271, 32, %s274, %s262
        $region36: #{voxel2sd_forward.4} parent=27 // pred_fallthru
          _
        // Predicated region
        $region37: #{voxel2sd_forward.4} parent=27 // pred_check
          %p277 = pneg %p163
        $region38: #{voxel2sd_forward.4} parent=27 // pred_check_branch
          %279 = sbr.rel (%p277) target = $region40
        $region39: #{voxel2sd_forward.4} parent=27 // pred_region
          %s280 = sand.u32 %s14, 1
          %s281 = scalar_lea.sflag [#allocation5], %s280
          %s282 = sand.u32 %s153, 1
          %s283 = smul.addr %s282, 2
          %s284 = scalar_lea.vmem [#allocation10], %s283
          %s286 = ssub.s32 32, 32
          %287 = vsyncadd %s281, %s286
          %s288 = smul.addr %s21, 2
          %s289 = smul.addr %s288, 16
          %s290 = scalar_lea.hbm %s5, %s289
          %s292 = sshll.u32 %s284, 4
          %s293 = int_to_ptr.vmem [resolvable:$true] %s292
          %295 = dma.hbm_to_vmem [thread:$0]  %s290, 32, %s293, %s281
        $region40: #{voxel2sd_forward.4} parent=27 // pred_fallthru
          _
      $region28: #{voxel2sd_forward.4} parent=5 // pred_fallthru
        _
      %p296 = scmp.le.s32.totalorder 1, %s14
      %p297 = scmp.lt.s32.totalorder %s14, 5
      %p298 = pnand %p296, %p297
      %p299 = pneg %p298
      // Predicated region
      $region41: #{voxel2sd_forward.4} parent=5 // pred_check
        _
      $region42: #{voxel2sd_forward.4} parent=5 // pred_check_branch
        %301 = sbr.rel (%p298) target = $region44
      $region43: #{voxel2sd_forward.4} parent=5 // pred_region
        %s302 = ssub.s32 %s14, 1
        // Predicated region
        $region45: #{voxel2sd_forward.4} parent=43 // pred_check
          %p303 = pneg %p68
        $region46: #{voxel2sd_forward.4} parent=43 // pred_check_branch
          %305 = sbr.rel (%p303) target = $region48
        $region47: #{voxel2sd_forward.4} parent=43 // pred_region
          %306 = dma.done [#allocation5], 32
        $region48: #{voxel2sd_forward.4} parent=43 // pred_fallthru
          _
        // Predicated region
        $region49: #{voxel2sd_forward.4} parent=43 // pred_check
          %p307 = pneg %p89
        $region50: #{voxel2sd_forward.4} parent=43 // pred_check_branch
          %309 = sbr.rel (%p307) target = $region52
        $region51: #{voxel2sd_forward.4} parent=43 // pred_region
          %310 = dma.done [#allocation7], 32
        $region52: #{voxel2sd_forward.4} parent=43 // pred_fallthru
          _
        %s311 = sand.u32 %s19, 1
        %s312 = scalar_lea.sflag [#allocation5], %s311
        %s313 = sand.u32 %s104, 1
        %s314 = smul.addr %s313, 128
        %s315 = scalar_lea.vmem [#allocation8], %s314
        // Predicated region
        $region53: #{voxel2sd_forward.4} parent=43 // pred_check
          %p316 = pneg %p117
        $region54: #{voxel2sd_forward.4} parent=43 // pred_check_branch
          %318 = sbr.rel (%p316) target = $region56
        $region55: #{voxel2sd_forward.4} parent=43 // pred_region
          %319 = dma.done %s312, 2048
        $region56: #{voxel2sd_forward.4} parent=43 // pred_fallthru
          _
        %s320 = sand.u32 %s19, 1
        %s321 = scalar_lea.sflag [#allocation5], %s320
        %s322 = sand.u32 %s130, 1
        %s323 = smul.addr %s322, 2
        %s324 = scalar_lea.vmem [#allocation9], %s323
        // Predicated region
        $region57: #{voxel2sd_forward.4} parent=43 // pred_check
          %p325 = pneg %p143
        $region58: #{voxel2sd_forward.4} parent=43 // pred_check_branch
          %327 = sbr.rel (%p325) target = $region60
        $region59: #{voxel2sd_forward.4} parent=43 // pred_region
          %328 = dma.done %s321, 32
        $region60: #{voxel2sd_forward.4} parent=43 // pred_fallthru
          _
        %s329 = sand.u32 %s19, 1
        %s330 = scalar_lea.sflag [#allocation5], %s329
        %s331 = sand.u32 %s156, 1
        %s332 = smul.addr %s331, 2
        %s333 = scalar_lea.vmem [#allocation10], %s332
        // Predicated region
        $region61: #{voxel2sd_forward.4} parent=43 // pred_check
          %p334 = pneg %p169
        $region62: #{voxel2sd_forward.4} parent=43 // pred_check_branch
          %336 = sbr.rel (%p334) target = $region64
        $region63: #{voxel2sd_forward.4} parent=43 // pred_region
          %337 = dma.done %s330, 32
        $region64: #{voxel2sd_forward.4} parent=43 // pred_fallthru
          _
        %p338 = pneg %p47
        %p339 = pneg %p44
        %p340 = pneg %p68
        %p341 = pneg %p65
        %p342 = pneg %p89
        %p343 = pneg %p86
        %s344 = sand.u32 %s19, 1
        %s345 = scalar_lea.sflag [#allocation5], %s344
        %s346 = sand.u32 %s104, 1
        %s347 = smul.addr %s346, 128
        %s348 = scalar_lea.vmem [#allocation8], %s347
        %p349 = pneg %p117
        %p350 = pneg %p114
        %s351 = sand.u32 %s19, 1
        %s352 = scalar_lea.sflag [#allocation5], %s351
        %s353 = sand.u32 %s130, 1
        %s354 = smul.addr %s353, 2
        %s355 = scalar_lea.vmem [#allocation9], %s354
        %p356 = pneg %p143
        %p357 = pneg %p140
        %s358 = sand.u32 %s19, 1
        %s359 = scalar_lea.sflag [#allocation5], %s358
        %s360 = sand.u32 %s156, 1
        %s361 = smul.addr %s360, 2
        %s362 = scalar_lea.vmem [#allocation10], %s361
        %p363 = pneg %p169
        %p364 = pneg %p166
        %p365 = pneg %p190
        %p366 = pneg %p187
        %s367 = smul.u32 16, %s24
        %p369 = scmp.eq.s32.totalorder %s23, 0
        %p370 = scmp.eq.s32.totalorder %s24, 0
        %p371 = pnand %p369, %p370
        %p372 = pneg %p371
        // Predicated region
        $region65: #{voxel2sd_forward.4} parent=43 // pred_check
          _
        $region66: #{voxel2sd_forward.4} parent=43 // pred_check_branch
          %374 = sbr.rel (%p371) target = $region68
        $region67: #{voxel2sd_forward.4} parent=43 // pred_region
          %v375 = vld [vmem:[%s0] sm:$0xff]
          %v376 = vld [vmem:[%s0 + $0x8] sm:$0xff]
          %v377 = vld [vmem:[#allocation4] sm:$0x3]
          %v378 = vld [vmem:[#allocation6] sm:$0x3]
          %v379 = vadd.f32 %v375, %v376
          %380 = vadd.xlane.f32.xlu0 %v379
          %v381 = vpop.xlane.xlu0 %380
          %v382 = vrcp.pop 256.0
          %v383 = vmul.f32 %v381, %v382
          %v384 = vsub.f32 %v375, %v383
          %v385 = vsub.f32 %v376, %v383
          %v386 = vmul.f32 %v384, %v384
          %v387 = vmul.f32 %v385, %v385
          %v388 = vadd.f32 %v386, %v387
          %389 = vadd.xlane.f32.xlu0 %v388
          %v390 = vpop.xlane.xlu0 %389
          %v391 = vmul.f32 %v390, %v382
          %v392 = vadd.f32 %v391, 1e-05
          %v393 = vrsqrt.pop %v392
          %v394 = vmul.f32 %v384, %v393
          %v395 = vmul.f32 %v385, %v393
          %v397 = vlaneseq
          %v398 = vshrl.u32 %v397, 7
          %v399 = vsub.s32 0, %v398
          %v400 = vrot.slane %v377, %v399
          %v401 = vlaneseq
          %v402 = vshrl.u32 %v401, 7
          %v403 = vsub.s32 1, %v402
          %v404 = vrot.slane %v377, %v403
          %v407 = vmul.f32 %v394, %v400
          %v408 = vmul.f32 %v395, %v404
          %v410 = vlaneseq
          %v411 = vshrl.u32 %v410, 7
          %v412 = vsub.s32 0, %v411
          %v413 = vrot.slane %v378, %v412
          %v414 = vlaneseq
          %v415 = vshrl.u32 %v414, 7
          %v416 = vsub.s32 1, %v415
          %v417 = vrot.slane %v378, %v416
          %v420 = vadd.f32 %v407, %v413
          %v421 = vadd.f32 %v408, %v417
          %v422 = vxor.u32 %v420, 2147483648
          %v423 = vxor.u32 %v421, 2147483648
          %v424 = vmul.f32 %v422, 1.442695
          %v425 = vpow.pop %v424
          %v426 = vmul.f32 %v423, 1.442695
          %v427 = vpow.pop %v426
          %v428 = vadd.f32 %v425, 1.0
          %v429 = vadd.f32 %v427, 1.0
          %v430 = vrcp.pop %v428
          %v431 = vmul.f32 1.0, %v430
          %v432 = vrcp.pop %v429
          %v433 = vmul.f32 1.0, %v432
          %v434 = vmul.f32 %v420, %v431
          %v435 = vmul.f32 %v421, %v433
          %436 = vst [vmem:[#allocation2] sm:$0xff] %v434
          %s437 = scalar_lea.vmem [#allocation2], 8
          %438 = vst [vmem:[%s437] sm:$0xff] %v435
        $region68: #{voxel2sd_forward.4} parent=43 // pred_fallthru
          _
        %s439 = smul.u32 %s24, 8
        %s440 = scalar_lea.vmem [#allocation2], %s439
        %v441 = vld [vmem:[%s440] sm:$0xff]
        %v442 = vpack.c.bf16 %v441, %v441
        %v443 = vld [vmem:[%s315] sm:$0xff]
        %v444 = vld [vmem:[%s315 + $0x8] sm:$0xff]
        %v445 = vld [vmem:[%s315 + $0x10] sm:$0xff]
        %v446 = vld [vmem:[%s315 + $0x18] sm:$0xff]
        %v447 = vld [vmem:[%s315 + $0x20] sm:$0xff]
        %v448 = vld [vmem:[%s315 + $0x28] sm:$0xff]
        %v449 = vld [vmem:[%s315 + $0x30] sm:$0xff]
        %v450 = vld [vmem:[%s315 + $0x38] sm:$0xff]
        %v451 = vld [vmem:[%s315 + $0x40] sm:$0xff]
        %v452 = vld [vmem:[%s315 + $0x48] sm:$0xff]
        %v453 = vld [vmem:[%s315 + $0x50] sm:$0xff]
        %v454 = vld [vmem:[%s315 + $0x58] sm:$0xff]
        %v455 = vld [vmem:[%s315 + $0x60] sm:$0xff]
        %v456 = vld [vmem:[%s315 + $0x68] sm:$0xff]
        %v457 = vld [vmem:[%s315 + $0x70] sm:$0xff]
        %v458 = vld [vmem:[%s315 + $0x78] sm:$0xff]
        %v475 = vunpack.c.l.b16 %v443
        %v476 = vunpack.c.h.b16 %v443
        %v477 = vunpack.c.l.b16 %v444
        %v478 = vunpack.c.h.b16 %v444
        %v479 = vunpack.c.l.b16 %v445
        %v480 = vunpack.c.h.b16 %v445
        %v481 = vunpack.c.l.b16 %v446
        %v482 = vunpack.c.h.b16 %v446
        %v483 = vunpack.c.l.b16 %v447
        %v484 = vunpack.c.h.b16 %v447
        %v485 = vunpack.c.l.b16 %v448
        %v486 = vunpack.c.h.b16 %v448
        %v487 = vunpack.c.l.b16 %v449
        %v488 = vunpack.c.h.b16 %v449
        %v489 = vunpack.c.l.b16 %v450
        %v490 = vunpack.c.h.b16 %v450
        %v491 = vunpack.c.l.b16 %v451
        %v492 = vunpack.c.h.b16 %v451
        %v493 = vunpack.c.l.b16 %v452
        %v494 = vunpack.c.h.b16 %v452
        %v495 = vunpack.c.l.b16 %v453
        %v496 = vunpack.c.h.b16 %v453
        %v497 = vunpack.c.l.b16 %v454
        %v498 = vunpack.c.h.b16 %v454
        %v499 = vunpack.c.l.b16 %v455
        %v500 = vunpack.c.h.b16 %v455
        %v501 = vunpack.c.l.b16 %v456
        %v502 = vunpack.c.h.b16 %v456
        %v503 = vunpack.c.l.b16 %v457
        %v504 = vunpack.c.h.b16 %v457
        %v505 = vunpack.c.l.b16 %v458
        %v506 = vunpack.c.h.b16 %v458
        %v507 = vpack.c.b16 %v477, %v475
        %v508 = vpack.c.b16 %v478, %v476
        %v509 = vpack.c.b16 %v481, %v479
        %v510 = vpack.c.b16 %v482, %v480
        %v511 = vpack.c.b16 %v485, %v483
        %v512 = vpack.c.b16 %v486, %v484
        %v513 = vpack.c.b16 %v489, %v487
        %v514 = vpack.c.b16 %v490, %v488
        %v515 = vpack.c.b16 %v493, %v491
        %v516 = vpack.c.b16 %v494, %v492
        %v517 = vpack.c.b16 %v497, %v495
        %v518 = vpack.c.b16 %v498, %v496
        %v519 = vpack.c.b16 %v501, %v499
        %v520 = vpack.c.b16 %v502, %v500
        %v521 = vpack.c.b16 %v505, %v503
        %v522 = vpack.c.b16 %v506, %v504
        %539 = vmatprep.subr.bf16.mxu0 %v508
        %540 = vmatpush1.bf16.msra.mxu0 %v507
        %541 = vmatprep.subr.bf16.mxu0 %v510
        %542 = vmatpush1.bf16.msra.mxu0 %v509
        %543 = vmatprep.subr.bf16.mxu0 %v512
        %544 = vmatpush1.bf16.msra.mxu0 %v511
        %545 = vmatprep.subr.bf16.mxu0 %v514
        %546 = vmatpush1.bf16.msra.mxu0 %v513
        %547 = vmatprep.subr.bf16.mxu0 %v516
        %548 = vmatpush1.bf16.msra.mxu0 %v515
        %549 = vmatprep.subr.bf16.mxu0 %v518
        %550 = vmatpush1.bf16.msra.mxu0 %v517
        %551 = vmatprep.subr.bf16.mxu0 %v520
        %552 = vmatpush1.bf16.msra.mxu0 %v519
        %553 = vmatprep.subr.bf16.mxu0 %v522
        %554 = vmatpush1.bf16.msra.mxu0 %v521
        %555 = vmatprep.subr.bf16.mxu0 0
        %556 = vmatpush1.bf16.msra.mxu0 0
        %557 = vmatprep.subr.bf16.mxu0 0
        %558 = vmatpush1.bf16.msra.mxu0 0
        %559 = vmatprep.subr.bf16.mxu0 0
        %560 = vmatpush1.bf16.msra.mxu0 0
        %561 = vmatprep.subr.bf16.mxu0 0
        %562 = vmatpush1.bf16.msra.mxu0 0
        %563 = vmatprep.subr.bf16.mxu0 0
        %564 = vmatpush1.bf16.msra.mxu0 0
        %565 = vmatprep.subr.bf16.mxu0 0
        %566 = vmatpush1.bf16.msra.mxu0 0
        %567 = vmatprep.subr.bf16.mxu0 0
        %568 = vmatpush1.bf16.msra.mxu0 0
        %569 = vmatprep.subr.bf16.mxu0 0
        %570 = vmatpush1.bf16.msra.mxu0 0
        %571 = vmatprep.mubr.bf16.mxu0 0
        %572 = vmatmul.mubr.bf16.gmra.mrb[0].mxu0 %v442
        %v573 = vpop.f32.mrb[0].mxu0
        %v574 = vadd.f32 0.0, %v573
        %v575 = vpop.f32.mrb[0].mxu0
        %v576 = vadd.f32 0.0, %v575
        %v577 = vpop.f32.mrb[0].mxu0
        %v578 = vpop.f32.mrb[0].mxu0
        %579 = vdwg.mxu0
        // Predicated region
        $region69: #{voxel2sd_forward.4} parent=43 // pred_check
          %p580 = pneg %p370
        $region70: #{voxel2sd_forward.4} parent=43 // pred_check_branch
          %582 = sbr.rel (%p580) target = $region72
        $region71: #{voxel2sd_forward.4} parent=43 // pred_region
          %583 = vst [vmem:[#allocation3] sm:$0xff] %v574
          %584 = vst [vmem:[#allocation3 + $0x8] sm:$0xff] %v576
        $region72: #{voxel2sd_forward.4} parent=43 // pred_fallthru
          _
        %p585 = scmp.gt.s32.totalorder %s24, 0
        // Predicated region
        $region73: #{voxel2sd_forward.4} parent=43 // pred_check
          %p586 = pneg %p585
        $region74: #{voxel2sd_forward.4} parent=43 // pred_check_branch
          %588 = sbr.rel (%p586) target = $region76
        $region75: #{voxel2sd_forward.4} parent=43 // pred_region
          %v589 = vld [vmem:[#allocation3] sm:$0xff]
          %v590 = vld [vmem:[#allocation3 + $0x8] sm:$0xff]
          %v591 = vadd.f32 %v589, %v574
          %v592 = vadd.f32 %v590, %v576
          %593 = vst [vmem:[#allocation3] sm:$0xff] %v591
          %594 = vst [vmem:[#allocation3 + $0x8] sm:$0xff] %v592
        $region76: #{voxel2sd_forward.4} parent=43 // pred_fallthru
          _
        %p595 = scmp.eq.s32.totalorder %s24, 1
        // Predicated region
        $region77: #{voxel2sd_forward.4} parent=43 // pred_check
          %p596 = pneg %p595
        $region78: #{voxel2sd_forward.4} parent=43 // pred_check_branch
          %598 = sbr.rel (%p596) target = $region80
        $region79: #{voxel2sd_forward.4} parent=43 // pred_region
          %v599 = vld [vmem:[#allocation3] sm:$0xff]
          %v600 = vld [vmem:[#allocation3 + $0x8] sm:$0xff]
          %v601 = vld [vmem:[%s324] sm:$0x3]
          %v602 = vld [vmem:[%s333] sm:$0x3]
          %v603 = vadd.f32 %v599, %v600
          %604 = vadd.xlane.f32.xlu0 %v603
          %v605 = vpop.xlane.xlu0 %604
          %v606 = vrcp.pop 256.0
          %v607 = vmul.f32 %v605, %v606
          %v608 = vsub.f32 %v599, %v607
          %v609 = vsub.f32 %v600, %v607
          %v610 = vmul.f32 %v608, %v608
          %v611 = vmul.f32 %v609, %v609
          %v612 = vadd.f32 %v610, %v611
          %613 = vadd.xlane.f32.xlu0 %v612
          %v614 = vpop.xlane.xlu0 %613
          %v615 = vmul.f32 %v614, %v606
          %v616 = vadd.f32 %v615, 1e-05
          %v617 = vrsqrt.pop %v616
          %v618 = vmul.f32 %v608, %v617
          %v619 = vmul.f32 %v609, %v617
          %v621 = vlaneseq
          %v622 = vshrl.u32 %v621, 7
          %v623 = vsub.s32 0, %v622
          %v624 = vrot.slane %v601, %v623
          %v625 = vlaneseq
          %v626 = vshrl.u32 %v625, 7
          %v627 = vsub.s32 1, %v626
          %v628 = vrot.slane %v601, %v627
          %v631 = vmul.f32 %v618, %v624
          %v632 = vmul.f32 %v619, %v628
          %v634 = vlaneseq
          %v635 = vshrl.u32 %v634, 7
          %v636 = vsub.s32 0, %v635
          %v637 = vrot.slane %v602, %v636
          %v638 = vlaneseq
          %v639 = vshrl.u32 %v638, 7
          %v640 = vsub.s32 1, %v639
          %v641 = vrot.slane %v602, %v640
          %v644 = vadd.f32 %v631, %v637
          %v645 = vadd.f32 %v632, %v641
          %v646 = vxor.u32 %v644, 2147483648
          %v647 = vxor.u32 %v645, 2147483648
          %v648 = vmul.f32 %v646, 1.442695
          %v649 = vpow.pop %v648
          %v650 = vmul.f32 %v647, 1.442695
          %v651 = vpow.pop %v650
          %v652 = vadd.f32 %v649, 1.0
          %v653 = vadd.f32 %v651, 1.0
          %v654 = vrcp.pop %v652
          %v655 = vmul.f32 1.0, %v654
          %v656 = vrcp.pop %v653
          %v657 = vmul.f32 1.0, %v656
          %v658 = vmul.f32 %v644, %v655
          %v659 = vmul.f32 %v645, %v657
          %v660 = vld [vmem:[#allocation2] sm:$0xff]
          %v661 = vadd.f32 %v660, %v658
          %662 = vst [vmem:[#allocation2] sm:$0xff] %v661
          %s663 = scalar_lea.vmem [#allocation2], 8
          %v664 = vld [vmem:[%s663] sm:$0xff]
          %v665 = vadd.f32 %v664, %v659
          %666 = vst [vmem:[%s663] sm:$0xff] %v665
        $region80: #{voxel2sd_forward.4} parent=43 // pred_fallthru
          _
        %p667 = scmp.eq.s32.totalorder %s23, 1
        %p668 = pnand %p667, %p595
        %p669 = pneg %p668
        // Predicated region
        $region81: #{voxel2sd_forward.4} parent=43 // pred_check
          _
        $region82: #{voxel2sd_forward.4} parent=43 // pred_check_branch
          %671 = sbr.rel (%p668) target = $region84
        $region83: #{voxel2sd_forward.4} parent=43 // pred_region
          %v672 = vld [vmem:[#allocation2] sm:$0xff]
          %v673 = vpack.c.bf16 %v672, %v672
          %674 = vst [vmem:[%s6] sm:$0xf] %v673
          %s675 = scalar_lea.vmem [#allocation2], 8
          %v676 = vld [vmem:[%s675] sm:$0xff]
          %v677 = vpack.c.bf16 %v676, %v676
          %678 = vst [vmem:[%s6 + $0x4] sm:$0xf] %v677
        $region84: #{voxel2sd_forward.4} parent=43 // pred_fallthru
          _
        // Predicated region
        $region85: #{voxel2sd_forward.4} parent=43 // pred_check
          %p679 = pneg %p187
        $region86: #{voxel2sd_forward.4} parent=43 // pred_check_branch
          %681 = sbr.rel (%p679) target = $region88
        $region87: #{voxel2sd_forward.4} parent=43 // pred_region
          _
        $region88: #{voxel2sd_forward.4} parent=43 // pred_fallthru
          _
        // Predicated region
        $region89: #{voxel2sd_forward.4} parent=43 // pred_check
          %p682 = pneg %p187
        $region90: #{voxel2sd_forward.4} parent=43 // pred_check_branch
          %684 = sbr.rel (%p682) target = $region92
        $region91: #{voxel2sd_forward.4} parent=43 // pred_region
          _
        $region92: #{voxel2sd_forward.4} parent=43 // pred_fallthru
          _
      $region44: #{voxel2sd_forward.4} parent=5 // pred_fallthru
        _
      %p685 = scmp.le.s32.totalorder 2, %s14
      // Predicated region
      $region93: #{voxel2sd_forward.4} parent=5 // pred_check
        %p686 = pneg %p685
      $region94: #{voxel2sd_forward.4} parent=5 // pred_check_branch
        %688 = sbr.rel (%p686) target = $region96
      $region95: #{voxel2sd_forward.4} parent=5 // pred_region
        %s689 = ssub.s32 %s14, 2
      $region96: #{voxel2sd_forward.4} parent=5 // pred_fallthru
        _
    $region6: #{voxel2sd_forward.4} parent=1 // loop_footer
      %s18 = sadd.s32 1, %s14
    $region7: #{voxel2sd_forward.4} parent=1 // loop_footer_branch
      %13 = sbr.rel target = $region3
    $region8: #{voxel2sd_forward.4} parent=1 // loop_exit
      _
    %690 = vsyncpa [#allocation5], 1
    %s691 = scalar_lea.sflag [#allocation5], 1
    %692 = vsyncpa %s691, 1
    %693 = vsyncpa [#allocation7], 1

// kernel: voxel2sd_forward.5
$region0: #{voxel2sd_forward.5}
  #allocation0 [shape = 'u32[]', space=smem, size = 0x4, offset = 0x4, fixed_abs, tag = 'smem constant byte address 0x4 - core index']
  #allocation1 [shape = 'u32[144,128]{1,0:T(1,128)}', space=vmem, size = 0x12000, scoped, tag = 'internal scratch']
  %s0 = inlined_call_operand.vmem [shape: bf16[8,256], index: 0, kind: input, shape index: {}]
  %s1 = inlined_call_operand.hbm [shape: bf16[256,4096], index: 1, kind: input, shape index: {}]
  %s2 = inlined_call_operand.vmem [shape: f32[8,4096], index: 2, kind: output, shape index: {}]
  %s3 = sld [smem:[#allocation0]]
  $region53: #{voxel2sd_forward.5} parent=0
    _
  %s5 = ssub.s32 1, %s3
  %s6 = scalar_select 0, %s5, %s3
  $region1: #{voxel2sd_forward.5} parent=0
    #allocation2 [shape = 'u8[262144]{0}', space=vmem, size = 0x40000, scoped, tag = 'input window, operand 1']
    #allocation3 [shape = 's32[2]{0}', space=sflag, size = 0x8, scoped, tag = 'scoped memory for voxel2sd_forward.5']
    %7 = vsyncpa [#allocation3], 0
    %s8 = scalar_lea.sflag [#allocation3], 1
    %9 = vsyncpa %s8, 0
    loop: start=0, step=1, limit=18
    $region2: #{voxel2sd_forward.5} parent=1 // loop_pre_header
      _
    $region3: #{voxel2sd_forward.5} parent=1 // loop_header
      %s11 = sphi 0, %s15
      %p12 = scmp.ge.s32.totalorder %s11, 18
      %s18 = sphi 0, %s30
      %s19 = sphi 0, %s26
      %s20 = sphi 0, %s18
      %s21 = sphi 0, %s19
      %s22 = sphi 0, %s20
      %s23 = sphi 0, %s21
      %s33 = sphi 0, %s35
      %s36 = sphi 0, %s33
      %s37 = sphi 0, %s36
      %s53 = sphi 0, %s37
      %s61 = sphi 0, %s63
      %s64 = sphi 0, %s61
      %s65 = sphi 0, %s64
      %s81 = sphi 0, %s65
      %s87 = sphi 0, %s89
      %s90 = sphi 0, %s87
      %s91 = sphi 0, %s90
      %s107 = sphi 0, %s91
    $region4: #{voxel2sd_forward.5} parent=1 // loop_header_branch
      %14 = sbr.rel (%p12) target = $region8
    $region5: #{voxel2sd_forward.5} parent=1 // loop_body
      %s16 = ssub.s32 %s11, 1
      %s17 = ssub.s32 %s11, 2
      %s24 = sadd.s32 1, %s19
      %p25 = scmp.ge.s32.totalorder %s24, 2
      %s26 = scalar_select %p25, 0, %s24
      %s27 = sadd.s32 1, %s18
      %s28 = scalar_select %p25, %s27, %s18
      %p29 = scmp.ge.s32.totalorder %s28, 8
      %s30 = scalar_select %p29, 0, %s28
      %s31 = ssub.s32 %s19, %s26
      %p32 = scmp.eq.s32.totalorder %s31, 0
      %s34 = sadd.s32 %s33, 1
      %s35 = scalar_select %p32, %s33, %s34
      %p38 = pneg %p32
      %p39 = scmp.eq.s32.totalorder %s11, 15
      %p40 = por %p38, %p39
      %p41 = scmp.ne.s32.totalorder %s33, %s36
      %p42 = scmp.eq.s32.totalorder %s11, 0
      %p43 = por %p41, %p42
      %p44 = scmp.ne.s32.totalorder %s33, %s36
      %p45 = scmp.eq.s32.totalorder %s16, 15
      %p46 = por %p44, %p45
      %p47 = scmp.ne.s32.totalorder %s36, %s37
      %p48 = scmp.eq.s32.totalorder %s16, 0
      %p49 = por %p47, %p48
      %p50 = scmp.ne.s32.totalorder %s36, %s37
      %p51 = scmp.eq.s32.totalorder %s17, 15
      %p52 = por %p50, %p51
      %p54 = scmp.ne.s32.totalorder %s37, %s53
      %p55 = scmp.eq.s32.totalorder %s17, 0
      %p56 = por %p54, %p55
      %s57 = ssub.s32 %s19, %s26
      %s58 = ssub.s32 %s18, %s30
      %s59 = sor.u32 %s57, %s58
      %p60 = scmp.eq.s32.totalorder %s59, 0
      %s62 = sadd.s32 %s61, 1
      %s63 = scalar_select %p60, %s61, %s62
      %p66 = pneg %p60
      %p67 = scmp.eq.s32.totalorder %s11, 15
      %p68 = por %p66, %p67
      %p69 = scmp.ne.s32.totalorder %s61, %s64
      %p70 = scmp.eq.s32.totalorder %s11, 0
      %p71 = por %p69, %p70
      %p72 = scmp.ne.s32.totalorder %s61, %s64
      %p73 = scmp.eq.s32.totalorder %s16, 15
      %p74 = por %p72, %p73
      %p75 = scmp.ne.s32.totalorder %s64, %s65
      %p76 = scmp.eq.s32.totalorder %s16, 0
      %p77 = por %p75, %p76
      %p78 = scmp.ne.s32.totalorder %s64, %s65
      %p79 = scmp.eq.s32.totalorder %s17, 15
      %p80 = por %p78, %p79
      %p82 = scmp.ne.s32.totalorder %s65, %s81
      %p83 = scmp.eq.s32.totalorder %s17, 0
      %p84 = por %p82, %p83
      %s85 = ssub.s32 %s18, %s30
      %p86 = scmp.eq.s32.totalorder %s85, 0
      %s88 = sadd.s32 %s87, 1
      %s89 = scalar_select %p86, %s87, %s88
      %p92 = pneg %p86
      %p93 = scmp.eq.s32.totalorder %s11, 15
      %p94 = por %p92, %p93
      %p95 = scmp.ne.s32.totalorder %s87, %s90
      %p96 = scmp.eq.s32.totalorder %s11, 0
      %p97 = por %p95, %p96
      %p98 = scmp.ne.s32.totalorder %s87, %s90
      %p99 = scmp.eq.s32.totalorder %s16, 15
      %p100 = por %p98, %p99
      %p101 = scmp.ne.s32.totalorder %s90, %s91
      %p102 = scmp.eq.s32.totalorder %s16, 0
      %p103 = por %p101, %p102
      %p104 = scmp.ne.s32.totalorder %s90, %s91
      %p105 = scmp.eq.s32.totalorder %s17, 15
      %p106 = por %p104, %p105
      %p108 = scmp.ne.s32.totalorder %s91, %s107
      %p109 = scmp.eq.s32.totalorder %s17, 0
      %p110 = por %p108, %p109
      %p111 = scmp.le.s32.totalorder 1, %s11
      %p112 = scmp.lt.s32.totalorder %s11, 17
      %p113 = pnand %p111, %p112
      %p114 = pneg %p113
      // Predicated region
      $region9: #{voxel2sd_forward.5} parent=5 // pred_check
        _
      $region10: #{voxel2sd_forward.5} parent=5 // pred_check_branch
        %116 = sbr.rel (%p113) target = $region12
      $region11: #{voxel2sd_forward.5} parent=5 // pred_region
        %s117 = ssub.s32 %s11, 1
      $region12: #{voxel2sd_forward.5} parent=5 // pred_fallthru
        _
      %p118 = scmp.lt.s32.totalorder %s11, 16
      // Predicated region
      $region13: #{voxel2sd_forward.5} parent=5 // pred_check
        %p119 = pneg %p118
      $region14: #{voxel2sd_forward.5} parent=5 // pred_check_branch
        %121 = sbr.rel (%p119) target = $region16
      $region15: #{voxel2sd_forward.5} parent=5 // pred_region
        // Predicated region
        $region17: #{voxel2sd_forward.5} parent=15 // pred_check
          %p122 = pneg %p43
        $region18: #{voxel2sd_forward.5} parent=15 // pred_check_branch
          %124 = sbr.rel (%p122) target = $region20
        $region19: #{voxel2sd_forward.5} parent=15 // pred_region
          %p125 = scmp.lt.s32.totalorder %s19, 1
          %s126 = scalar_select %p125, %s19, 1
          %s127 = smul.addr %s126, 4
          %s128 = scalar_lea.vmem %s0, %s127
        $region20: #{voxel2sd_forward.5} parent=15 // pred_fallthru
          _
        // Predicated region
        $region21: #{voxel2sd_forward.5} parent=15 // pred_check
          %p129 = pneg %p71
        $region22: #{voxel2sd_forward.5} parent=15 // pred_check_branch
          %131 = sbr.rel (%p129) target = $region24
        $region23: #{voxel2sd_forward.5} parent=15 // pred_region
          %s132 = sand.u32 %s61, 1
          %s133 = scalar_lea.sflag [#allocation3], %s132
          %s134 = sand.u32 %s61, 1
          %s135 = smul.addr %s134, 256
          %s136 = scalar_lea.vmem [#allocation2], %s135
          %s137 = smul.u32 16, %s19
          %s138 = smul.u32 4, %s18
          %s140 = ssub.s32 4096, 4096
          %141 = vsyncadd %s133, %s140
          %s142 = smul.addr %s137, 32
          %s143 = sadd.s32 %s138, %s142
          %s144 = smul.addr %s143, 64
          %s145 = scalar_lea.hbm %s1, %s144
          %s146 = sshll.u32 %s136, 4
          %s147 = int_to_ptr.vmem [resolvable:$true] %s146
          %152 = dma.hbm_to_vmem [thread:$0]  %s145, 4096, %s147, %s133, 2048, 256, 16
        $region24: #{voxel2sd_forward.5} parent=15 // pred_fallthru
          _
      $region16: #{voxel2sd_forward.5} parent=5 // pred_fallthru
        _
      %p153 = scmp.le.s32.totalorder 1, %s11
      %p154 = scmp.lt.s32.totalorder %s11, 17
      %p155 = pnand %p153, %p154
      %p156 = pneg %p155
      // Predicated region
      $region25: #{voxel2sd_forward.5} parent=5 // pred_check
        _
      $region26: #{voxel2sd_forward.5} parent=5 // pred_check_branch
        %158 = sbr.rel (%p155) target = $region28
      $region27: #{voxel2sd_forward.5} parent=5 // pred_region
        %s159 = ssub.s32 %s11, 1
        %s160 = sand.u32 %s64, 1
        %s161 = scalar_lea.sflag [#allocation3], %s160
        %s162 = sand.u32 %s64, 1
        %s163 = smul.addr %s162, 256
        %s164 = scalar_lea.vmem [#allocation2], %s163
        // Predicated region
        $region29: #{voxel2sd_forward.5} parent=27 // pred_check
          %p165 = pneg %p77
        $region30: #{voxel2sd_forward.5} parent=27 // pred_check_branch
          %167 = sbr.rel (%p165) target = $region32
        $region31: #{voxel2sd_forward.5} parent=27 // pred_region
          %168 = dma.done %s161, 4096
        $region32: #{voxel2sd_forward.5} parent=27 // pred_fallthru
          _
        %p169 = scmp.lt.s32.totalorder %s21, 1
        %s170 = scalar_select %p169, %s21, 1
        %s171 = smul.addr %s170, 4
        %s172 = scalar_lea.vmem %s0, %s171
        %p173 = pneg %p49
        %p174 = pneg %p46
        %s175 = sand.u32 %s64, 1
        %s176 = scalar_lea.sflag [#allocation3], %s175
        %s177 = sand.u32 %s64, 1
        %s178 = smul.addr %s177, 256
        %s179 = scalar_lea.vmem [#allocation2], %s178
        %p180 = pneg %p77
        %p181 = pneg %p74
        %p182 = pneg %p103
        %p183 = pneg %p100
        %s184 = smul.u32 4, %s20
        %p185 = scmp.lt.s32.totalorder %s184, 31
        %s186 = scalar_select %p185, %s184, 31
        %s187 = smul.addr %s186, 8
        %s188 = scalar_lea.vmem %s2, %s187
        %p189 = scmp.lt.s32.totalorder %s21, 1
        %s190 = scalar_select %p189, %s21, 1
        %s191 = smul.addr %s190, 4
        %s192 = scalar_lea.vmem %s0, %s191
        %s193 = smul.u32 16, %s21
        %s194 = smul.u32 4, %s20
        %s195 = smul.u32 4, %s20
        %p196 = scmp.lt.s32.totalorder %s195, 31
        %s197 = scalar_select %p196, %s195, 31
        %s198 = smul.addr %s197, 8
        %s199 = scalar_lea.vmem %s2, %s198
        %s200 = smul.u32 4, %s20
        %v202 = vld [vmem:[%s192] sm:$0xf]
        %v203 = vld [vmem:[%s164] sm:$0xff]
        %v204 = vld [vmem:[%s164 + $0x8] sm:$0xff]
        %v205 = vld [vmem:[%s164 + $0x10] sm:$0xff]
        %v206 = vld [vmem:[%s164 + $0x18] sm:$0xff]
        %v207 = vld [vmem:[%s164 + $0x20] sm:$0xff]
        %v208 = vld [vmem:[%s164 + $0x28] sm:$0xff]
        %v209 = vld [vmem:[%s164 + $0x30] sm:$0xff]
        %v210 = vld [vmem:[%s164 + $0x38] sm:$0xff]
        %v211 = vld [vmem:[%s164 + $0x40] sm:$0xff]
        %v212 = vld [vmem:[%s164 + $0x48] sm:$0xff]
        %v213 = vld [vmem:[%s164 + $0x50] sm:$0xff]
        %v214 = vld [vmem:[%s164 + $0x58] sm:$0xff]
        %v215 = vld [vmem:[%s164 + $0x60] sm:$0xff]
        %v216 = vld [vmem:[%s164 + $0x68] sm:$0xff]
        %v217 = vld [vmem:[%s164 + $0x70] sm:$0xff]
        %v218 = vld [vmem:[%s164 + $0x78] sm:$0xff]
        %v219 = vld [vmem:[%s164 + $0x80] sm:$0xff]
        %v220 = vld [vmem:[%s164 + $0x88] sm:$0xff]
        %v221 = vld [vmem:[%s164 + $0x90] sm:$0xff]
        %v222 = vld [vmem:[%s164 + $0x98] sm:$0xff]
        %v223 = vld [vmem:[%s164 + $0xa0] sm:$0xff]
        %v224 = vld [vmem:[%s164 + $0xa8] sm:$0xff]
        %v225 = vld [vmem:[%s164 + $0xb0] sm:$0xff]
        %v226 = vld [vmem:[%s164 + $0xb8] sm:$0xff]
        %v227 = vld [vmem:[%s164 + $0xc0] sm:$0xff]
        %v228 = vld [vmem:[%s164 + $0xc8] sm:$0xff]
        %v229 = vld [vmem:[%s164 + $0xd0] sm:$0xff]
        %v230 = vld [vmem:[%s164 + $0xd8] sm:$0xff]
        %v231 = vld [vmem:[%s164 + $0xe0] sm:$0xff]
        %v232 = vld [vmem:[%s164 + $0xe8] sm:$0xff]
        %v233 = vld [vmem:[%s164 + $0xf0] sm:$0xff]
        %v234 = vld [vmem:[%s164 + $0xf8] sm:$0xff]
        %v267 = vunpack.c.l.b16 %v203
        %v268 = vunpack.c.h.b16 %v203
        %v269 = vunpack.c.l.b16 %v204
        %v270 = vunpack.c.h.b16 %v204
        %v271 = vunpack.c.l.b16 %v205
        %v272 = vunpack.c.h.b16 %v205
        %v273 = vunpack.c.l.b16 %v206
        %v274 = vunpack.c.h.b16 %v206
        %v275 = vunpack.c.l.b16 %v207
        %v276 = vunpack.c.h.b16 %v207
        %v277 = vunpack.c.l.b16 %v208
        %v278 = vunpack.c.h.b16 %v208
        %v279 = vunpack.c.l.b16 %v209
        %v280 = vunpack.c.h.b16 %v209
        %v281 = vunpack.c.l.b16 %v210
        %v282 = vunpack.c.h.b16 %v210
        %v283 = vunpack.c.l.b16 %v211
        %v284 = vunpack.c.h.b16 %v211
        %v285 = vunpack.c.l.b16 %v212
        %v286 = vunpack.c.h.b16 %v212
        %v287 = vunpack.c.l.b16 %v213
        %v288 = vunpack.c.h.b16 %v213
        %v289 = vunpack.c.l.b16 %v214
        %v290 = vunpack.c.h.b16 %v214
        %v291 = vunpack.c.l.b16 %v215
        %v292 = vunpack.c.h.b16 %v215
        %v293 = vunpack.c.l.b16 %v216
        %v294 = vunpack.c.h.b16 %v216
        %v295 = vunpack.c.l.b16 %v217
        %v296 = vunpack.c.h.b16 %v217
        %v297 = vunpack.c.l.b16 %v218
        %v298 = vunpack.c.h.b16 %v218
        %v299 = vunpack.c.l.b16 %v219
        %v300 = vunpack.c.h.b16 %v219
        %v301 = vunpack.c.l.b16 %v220
        %v302 = vunpack.c.h.b16 %v220
        %v303 = vunpack.c.l.b16 %v221
        %v304 = vunpack.c.h.b16 %v221
        %v305 = vunpack.c.l.b16 %v222
        %v306 = vunpack.c.h.b16 %v222
        %v307 = vunpack.c.l.b16 %v223
        %v308 = vunpack.c.h.b16 %v223
        %v309 = vunpack.c.l.b16 %v224
        %v310 = vunpack.c.h.b16 %v224
        %v311 = vunpack.c.l.b16 %v225
        %v312 = vunpack.c.h.b16 %v225
        %v313 = vunpack.c.l.b16 %v226
        %v314 = vunpack.c.h.b16 %v226
        %v315 = vunpack.c.l.b16 %v227
        %v316 = vunpack.c.h.b16 %v227
        %v317 = vunpack.c.l.b16 %v228
        %v318 = vunpack.c.h.b16 %v228
        %v319 = vunpack.c.l.b16 %v229
        %v320 = vunpack.c.h.b16 %v229
        %v321 = vunpack.c.l.b16 %v230
        %v322 = vunpack.c.h.b16 %v230
        %v323 = vunpack.c.l.b16 %v231
        %v324 = vunpack.c.h.b16 %v231
        %v325 = vunpack.c.l.b16 %v232
        %v326 = vunpack.c.h.b16 %v232
        %v327 = vunpack.c.l.b16 %v233
        %v328 = vunpack.c.h.b16 %v233
        %v329 = vunpack.c.l.b16 %v234
        %v330 = vunpack.c.h.b16 %v234
        %v331 = vpack.c.b16 %v271, %v267
        %v332 = vpack.c.b16 %v272, %v268
        %v333 = vpack.c.b16 %v273, %v269
        %v334 = vpack.c.b16 %v274, %v270
        %v335 = vpack.c.b16 %v279, %v275
        %v336 = vpack.c.b16 %v280, %v276
        %v337 = vpack.c.b16 %v281, %v277
        %v338 = vpack.c.b16 %v282, %v278
        %v339 = vpack.c.b16 %v287, %v283
        %v340 = vpack.c.b16 %v288, %v284
        %v341 = vpack.c.b16 %v289, %v285
        %v342 = vpack.c.b16 %v290, %v286
        %v343 = vpack.c.b16 %v295, %v291
        %v344 = vpack.c.b16 %v296, %v292
        %v345 = vpack.c.b16 %v297, %v293
        %v346 = vpack.c.b16 %v298, %v294
        %v347 = vpack.c.b16 %v303, %v299
        %v348 = vpack.c.b16 %v304, %v300
        %v349 = vpack.c.b16 %v305, %v301
        %v350 = vpack.c.b16 %v306, %v302
        %v351 = vpack.c.b16 %v311, %v307
        %v352 = vpack.c.b16 %v312, %v308
        %v353 = vpack.c.b16 %v313, %v309
        %v354 = vpack.c.b16 %v314, %v310
        %v355 = vpack.c.b16 %v319, %v315
        %v356 = vpack.c.b16 %v320, %v316
        %v357 = vpack.c.b16 %v321, %v317
        %v358 = vpack.c.b16 %v322, %v318
        %v359 = vpack.c.b16 %v327, %v323
        %v360 = vpack.c.b16 %v328, %v324
        %v361 = vpack.c.b16 %v329, %v325
        %v362 = vpack.c.b16 %v330, %v326
        %395 = vmatprep.subr.bf16.mxu0 %v332
        %396 = vmatpush1.bf16.msra.mxu0 %v331
        %397 = vmatprep.subr.bf16.mxu0 %v336
        %398 = vmatpush1.bf16.msra.mxu0 %v335
        %399 = vmatprep.subr.bf16.mxu0 %v340
        %400 = vmatpush1.bf16.msra.mxu0 %v339
        %401 = vmatprep.subr.bf16.mxu0 %v344
        %402 = vmatpush1.bf16.msra.mxu0 %v343
        %403 = vmatprep.subr.bf16.mxu0 %v348
        %404 = vmatpush1.bf16.msra.mxu0 %v347
        %405 = vmatprep.subr.bf16.mxu0 %v352
        %406 = vmatpush1.bf16.msra.mxu0 %v351
        %407 = vmatprep.subr.bf16.mxu0 %v356
        %408 = vmatpush1.bf16.msra.mxu0 %v355
        %409 = vmatprep.subr.bf16.mxu0 %v360
        %410 = vmatpush1.bf16.msra.mxu0 %v359
        %411 = vmatprep.subr.bf16.mxu0 0
        %412 = vmatpush1.bf16.msra.mxu0 0
        %413 = vmatprep.subr.bf16.mxu0 0
        %414 = vmatpush1.bf16.msra.mxu0 0
        %415 = vmatprep.subr.bf16.mxu0 0
        %416 = vmatpush1.bf16.msra.mxu0 0
        %417 = vmatprep.subr.bf16.mxu0 0
        %418 = vmatpush1.bf16.msra.mxu0 0
        %419 = vmatprep.subr.bf16.mxu0 0
        %420 = vmatpush1.bf16.msra.mxu0 0
        %421 = vmatprep.subr.bf16.mxu0 0
        %422 = vmatpush1.bf16.msra.mxu0 0
        %423 = vmatprep.subr.bf16.mxu0 0
        %424 = vmatpush1.bf16.msra.mxu0 0
        %425 = vmatprep.subr.bf16.mxu0 0
        %426 = vmatpush1.bf16.msra.mxu0 0
        %427 = vmatprep.mubr.bf16.mxu0 0
        %428 = vmatmul.mubr.bf16.gmra.mrb[0].mxu0 %v202
        %v429 = vpop.f32.mrb[0].mxu0
        %v430 = vadd.f32 0.0, %v429
        %v431 = vpop.f32.mrb[0].mxu0
        %v432 = vadd.f32 0.0, %v431
        %v433 = vpop.f32.mrb[0].mxu0
        %v434 = vpop.f32.mrb[0].mxu0
        %435 = vdwg.mxu0
        %436 = vmatprep.subr.bf16.mxu0 %v334
        %437 = vmatpush1.bf16.msra.mxu0 %v333
        %438 = vmatprep.subr.bf16.mxu0 %v338
        %439 = vmatpush1.bf16.msra.mxu0 %v337
        %440 = vmatprep.subr.bf16.mxu0 %v342
        %441 = vmatpush1.bf16.msra.mxu0 %v341
        %442 = vmatprep.subr.bf16.mxu0 %v346
        %443 = vmatpush1.bf16.msra.mxu0 %v345
        %444 = vmatprep.subr.bf16.mxu0 %v350
        %445 = vmatpush1.bf16.msra.mxu0 %v349
        %446 = vmatprep.subr.bf16.mxu0 %v354
        %447 = vmatpush1.bf16.msra.mxu0 %v353
        %448 = vmatprep.subr.bf16.mxu0 %v358
        %449 = vmatpush1.bf16.msra.mxu0 %v357
        %450 = vmatprep.subr.bf16.mxu0 %v362
        %451 = vmatpush1.bf16.msra.mxu0 %v361
        %452 = vmatprep.subr.bf16.mxu0 0
        %453 = vmatpush1.bf16.msra.mxu0 0
        %454 = vmatprep.subr.bf16.mxu0 0
        %455 = vmatpush1.bf16.msra.mxu0 0
        %456 = vmatprep.subr.bf16.mxu0 0
        %457 = vmatpush1.bf16.msra.mxu0 0
        %458 = vmatprep.subr.bf16.mxu0 0
        %459 = vmatpush1.bf16.msra.mxu0 0
        %460 = vmatprep.subr.bf16.mxu0 0
        %461 = vmatpush1.bf16.msra.mxu0 0
        %462 = vmatprep.subr.bf16.mxu0 0
        %463 = vmatpush1.bf16.msra.mxu0 0
        %464 = vmatprep.subr.bf16.mxu0 0
        %465 = vmatpush1.bf16.msra.mxu0 0
        %466 = vmatprep.subr.bf16.mxu0 0
        %467 = vmatpush1.bf16.msra.mxu0 0
        %468 = vmatprep.mubr.bf16.mxu0 0
        %469 = vmatmul.mubr.bf16.gmra.mrb[0].mxu0 %v202
        %v470 = vpop.f32.mrb[0].mxu0
        %v471 = vadd.f32 0.0, %v470
        %v472 = vpop.f32.mrb[0].mxu0
        %v473 = vadd.f32 0.0, %v472
        %v474 = vpop.f32.mrb[0].mxu0
        %v475 = vpop.f32.mrb[0].mxu0
        %476 = vdwg.mxu0
        %p477 = scmp.eq.s32.totalorder %s21, 0
        // Predicated region
        $region33: #{voxel2sd_forward.5} parent=27 // pred_check
          %p478 = pneg %p477
        $region34: #{voxel2sd_forward.5} parent=27 // pred_check_branch
          %480 = sbr.rel (%p478) target = $region36
        $region35: #{voxel2sd_forward.5} parent=27 // pred_region
          %481 = vst [vmem:[%s199] sm:$0xff] %v430
          %482 = vst [vmem:[%s199 + $0x8] sm:$0xff] %v432
          %483 = vst [vmem:[%s199 + $0x10] sm:$0xff] %v471
          %484 = vst [vmem:[%s199 + $0x18] sm:$0xff] %v473
        $region36: #{voxel2sd_forward.5} parent=27 // pred_fallthru
          _
        %p485 = scmp.gt.s32.totalorder %s21, 0
        // Predicated region
        $region37: #{voxel2sd_forward.5} parent=27 // pred_check
          %p486 = pneg %p485
        $region38: #{voxel2sd_forward.5} parent=27 // pred_check_branch
          %488 = sbr.rel (%p486) target = $region40
        $region39: #{voxel2sd_forward.5} parent=27 // pred_region
          %v489 = vld [vmem:[%s199] sm:$0xff]
          %v490 = vld [vmem:[%s199 + $0x8] sm:$0xff]
          %v491 = vld [vmem:[%s199 + $0x10] sm:$0xff]
          %v492 = vld [vmem:[%s199 + $0x18] sm:$0xff]
          %v493 = vadd.f32 %v489, %v430
          %v494 = vadd.f32 %v490, %v432
          %v495 = vadd.f32 %v491, %v471
          %v496 = vadd.f32 %v492, %v473
          %497 = vst [vmem:[%s199] sm:$0xff] %v493
          %498 = vst [vmem:[%s199 + $0x8] sm:$0xff] %v494
          %499 = vst [vmem:[%s199 + $0x10] sm:$0xff] %v495
          %500 = vst [vmem:[%s199 + $0x18] sm:$0xff] %v496
        $region40: #{voxel2sd_forward.5} parent=27 // pred_fallthru
          _
        %s501 = smul.u32 4, %s20
        %p502 = scmp.lt.s32.totalorder %s501, 31
        %s503 = scalar_select %p502, %s501, 31
        %s504 = smul.addr %s503, 8
        %s505 = scalar_lea.vmem %s2, %s504
        // Predicated region
        $region41: #{voxel2sd_forward.5} parent=27 // pred_check
          %p506 = pneg %p100
        $region42: #{voxel2sd_forward.5} parent=27 // pred_check_branch
          %508 = sbr.rel (%p506) target = $region44
        $region43: #{voxel2sd_forward.5} parent=27 // pred_region
          %s509 = smul.u32 4, %s20
        $region44: #{voxel2sd_forward.5} parent=27 // pred_fallthru
          _
      $region28: #{voxel2sd_forward.5} parent=5 // pred_fallthru
        _
      %p510 = scmp.le.s32.totalorder 2, %s11
      // Predicated region
      $region45: #{voxel2sd_forward.5} parent=5 // pred_check
        %p511 = pneg %p510
      $region46: #{voxel2sd_forward.5} parent=5 // pred_check_branch
        %513 = sbr.rel (%p511) target = $region48
      $region47: #{voxel2sd_forward.5} parent=5 // pred_region
        %s514 = ssub.s32 %s11, 2
        // Predicated region
        $region49: #{voxel2sd_forward.5} parent=47 // pred_check
          %p515 = pneg %p106
        $region50: #{voxel2sd_forward.5} parent=47 // pred_check_branch
          %517 = sbr.rel (%p515) target = $region52
        $region51: #{voxel2sd_forward.5} parent=47 // pred_region
          %s518 = smul.u32 4, %s22
          %p519 = scmp.lt.s32.totalorder %s518, 31
          %s520 = scalar_select %p519, %s518, 31
          %s521 = smul.addr %s520, 8
          %s522 = scalar_lea.vmem %s2, %s521
        $region52: #{voxel2sd_forward.5} parent=47 // pred_fallthru
          _
      $region48: #{voxel2sd_forward.5} parent=5 // pred_fallthru
        _
    $region6: #{voxel2sd_forward.5} parent=1 // loop_footer
      %s15 = sadd.s32 1, %s11
    $region7: #{voxel2sd_forward.5} parent=1 // loop_footer_branch
      %10 = sbr.rel target = $region3
    $region8: #{voxel2sd_forward.5} parent=1 // loop_exit
      _
    %523 = vsyncpa [#allocation3], 1
    %s524 = scalar_lea.sflag [#allocation3], 1
    %525 = vsyncpa %s524, 1

</llo_original>
